<compile_context>
chip_gen: v7x
topology: tpu7x:2x2x1
jax: 0.10.0
libtpu: 0.0.40
codegen_flags: <defaults>
</compile_context>

<pallas_src>
import numpy as np
import jax
import jax.numpy as jnp
from jax.experimental import pallas as pl
from jax.experimental.pallas import tpu as pltpu

# ----------------------------- config (small) ------------------------------
BATCH = 2
CHUNKS_PER_NOTE = (2, 2)                 # "chunks" tensor (host-side python ints)
NUM_CHUNKS = sum(CHUNKS_PER_NOTE)        # C = 4
SEQ = 8                                  # S
HIDDEN = 32                              # bert hidden size H
NUM_HEADS = 2
HEAD_DIM = HIDDEN // NUM_HEADS           # 16
FFN = 64                                 # bert intermediate size
INTER_MLP = 16                           # intermediate_mlp_size I  (2I = 32)
TABULAR = 8                              # tabular_size T
VOCAB = 64
TYPE_VOCAB = 2

CS = NUM_CHUNKS * SEQ                    # 32 rows for the batched matmuls
NHHD = NUM_HEADS * HEAD_DIM              # 32
COMB_VOCAB = TYPE_VOCAB * VOCAB          # 128 -> lane-dense in-kernel one-hot
LANES = 128


# ----------------------------- shared math ---------------------------------
def _layer_norm(x, gamma, beta, eps=1e-12):
    mu = jnp.mean(x, axis=-1, keepdims=True)
    var = jnp.mean((x - mu) ** 2, axis=-1, keepdims=True)
    return (x - mu) * jax.lax.rsqrt(var + eps) * gamma + beta


def _gelu(x):
    c = 0.7978845608028654  # sqrt(2/pi)
    return 0.5 * x * (1.0 + jnp.tanh(c * (x + 0.044715 * x * x * x)))


# ------------------- Pallas kernel: fully fused forward ---------------------
def make_fused_kernel(woff, voff):
    """Kernel factory; woff/voff are static python offset tables into the
    weight / vector slabs (baked into the trace, zero runtime cost)."""

    def kernel(tok_ref, mask_ref, ptab_ref, w_ref, v_ref, out_ref):
        f32 = jnp.float32

        def W(name):                      # 8-row-aligned static slab slice
            off, k, n = woff[name]
            return w_ref[off:off + k, 0:n]

        def V(name):                      # one (1, n) row of the vector slab
            row, n = voff[name]
            return v_ref[row:row + 1, 0:n]

        # ---- embeddings fused in-kernel: lane-dense one-hot on the MXU -----
        cid = tok_ref[...]                                          # (CS,1) i32
        iota = jax.lax.broadcasted_iota(jnp.int32, (CS, COMB_VOCAB), 1)
        onehot = (iota == cid).astype(f32)                          # (CS,128)
        x2 = jnp.dot(onehot, W("emb"), preferred_element_type=f32) + W("pos")
        x2 = _layer_norm(x2, V("emb_ln_g"), V("emb_ln_b"))          # (CS, H)

        # ---- encoder layer: one fused QKV projection, all chunks batched ---
        qkv = jnp.dot(x2, W("wqkv"), preferred_element_type=f32) + V("bqkv")

        def fold_heads(m):
            # per-(q/k/v, head) column block of the fused projection output,
            # stacked head-major along the (untiled) batch axis
            blocks = []
            for h in range(NUM_HEADS):
                off = (m * NUM_HEADS + h) * HEAD_DIM
                blocks.append(qkv[:, off:off + HEAD_DIM]
                              .reshape(NUM_CHUNKS, SEQ, HEAD_DIM))
            return jnp.concatenate(blocks, axis=0)                  # (NH*C,S,HD)

        q = fold_heads(0)
        k = fold_heads(1)
        v = fold_heads(2)

        neg = ((1.0 - mask_ref[...]) * (-1e9)).reshape(NUM_CHUNKS, 1, SEQ)
        negb = jnp.concatenate([neg] * NUM_HEADS, axis=0)           # (NH*C,1,S)

        scale = 1.0 / (HEAD_DIM ** 0.5)
        # single head-batched einsums (no per-head python loop of matmuls)
        s = jnp.einsum("bsd,btd->bst", q, k,
                       preferred_element_type=f32) * scale + negb
        s = s - jnp.max(s, axis=-1, keepdims=True)
        e = jnp.exp(s)
        # approx reciprocal is safe here: sum(e) >= 1 after max-subtraction
        p = e * pl.reciprocal(jnp.sum(e, axis=-1, keepdims=True), approx=True)
        ctx = jnp.einsum("bst,btd->bsd", p, v,
                         preferred_element_type=f32)                # (NH*C,S,HD)

        ctx = jnp.concatenate(
            [ctx[h * NUM_CHUNKS:(h + 1) * NUM_CHUNKS] for h in range(NUM_HEADS)],
            axis=-1).reshape(CS, NHHD)                              # (C*S, H)
        attn = jnp.dot(ctx, W("wo"), preferred_element_type=f32) + V("bo")

        h1 = _layer_norm(x2 + attn, V("ln1_g"), V("ln1_b"))         # (C*S, H)
        ff = _gelu(jnp.dot(h1, W("wf1"), preferred_element_type=f32) + V("bf1"))
        ff = jnp.dot(ff, W("wf2"), preferred_element_type=f32) + V("bf2")
        seq = _layer_norm(h1 + ff, V("ln2_g"), V("ln2_b"))          # (C*S, H)

        # ---- classifier head, fused in the same kernel ----
        # CLS token = sublane 0 of each SEQ(=8)-row group (no select matmul)
        cls = seq.reshape(NUM_CHUNKS, SEQ, HIDDEN)[:, 0, :]         # (C, H)
        pooled = jnp.tanh(jnp.dot(cls, W("wp"),
                                  preferred_element_type=f32) + V("bp"))
        # scatter_mean over chunks == pooling-matrix matmul
        ptab = ptab_ref[...]                                        # (B, C+T)
        pool = ptab[:, 0:NUM_CHUNKS]
        tab = ptab[:, NUM_CHUNKS:NUM_CHUNKS + TABULAR]
        xb = jnp.dot(pool, pooled, preferred_element_type=f32)      # (B, H)
        # MLP (dropout == identity at inference)
        hh = jnp.maximum(jnp.dot(xb, W("w1"),
                                 preferred_element_type=f32) + V("b1"), 0.0)
        hh = jnp.maximum(jnp.dot(hh, W("w2"),
                                 preferred_element_type=f32) + V("b2"), 0.0)
        # fc over concat([hh, tabular]) as VPU row-dot (no N=1 MXU pushes)
        logit = (jnp.sum(hh * V("wfce"), axis=-1, keepdims=True)
                 + jnp.sum(tab * V("wfct"), axis=-1, keepdims=True)
                 + V("bfc"))                                        # (B, 1)
        # exact sigmoid for the user-facing risk score
        out_ref[...] = 1.0 / (1.0 + jnp.exp(-logit))

    return kernel


def fused_forward(tok, mask, ptab, w_slab, v_slab, woff, voff):
    kernel = make_fused_kernel(woff, voff)
    vmem = pl.BlockSpec(memory_space=pltpu.MemorySpace.VMEM)
    # Scaling plan (not needed at these toy sizes): at real BERT sizes use a
    # grid over chunks marked "parallel" (2 TCs on v7x), K-tile the FFN
    # weights with BlockSpecs, cast weights to bf16, and set
    # pltpu.CompilerParams(vmem_limit_bytes=...) to stay under v7x's 64 MiB.
    risk = pl.pallas_call(
        kernel,
        in_specs=[vmem] * 5,
        out_specs=pl.BlockSpec(memory_space=pltpu.MemorySpace.VMEM),
        out_shape=jax.ShapeDtypeStruct((BATCH, 1), jnp.float32),
    )(tok, mask, ptab, w_slab, v_slab)
    return risk[:, 0]


# ------------------------------- parameters ---------------------------------
def init_params(key):
    keys = iter(jax.random.split(key, 32))

    def nrm(shape, scale=0.05):
        return scale * jax.random.normal(next(keys), shape, jnp.float32)

    params = {}
    # embeddings
    params["word_emb"] = nrm((VOCAB, HIDDEN), 0.1)
    params["pos_emb"] = nrm((SEQ, HIDDEN), 0.1)
    params["type_emb"] = nrm((TYPE_VOCAB, HIDDEN), 0.1)
    params["emb_ln_g"] = jnp.ones((1, HIDDEN), jnp.float32)
    params["emb_ln_b"] = jnp.zeros((1, HIDDEN), jnp.float32)
    # encoder layer, stored per-head (HF-style); fused/packed in pack_params
    params["layer"] = [
        nrm((NUM_HEADS, HIDDEN, HEAD_DIM)), nrm((NUM_HEADS, 1, HEAD_DIM)),   # wq, bq
        nrm((NUM_HEADS, HIDDEN, HEAD_DIM)), nrm((NUM_HEADS, 1, HEAD_DIM)),   # wk, bk
        nrm((NUM_HEADS, HIDDEN, HEAD_DIM)), nrm((NUM_HEADS, 1, HEAD_DIM)),   # wv, bv
        nrm((NUM_HEADS, HEAD_DIM, HIDDEN)), nrm((1, HIDDEN)),                # wo, bo
        jnp.ones((1, HIDDEN), jnp.float32), jnp.zeros((1, HIDDEN), jnp.float32),  # ln1
        nrm((HIDDEN, FFN)), nrm((1, FFN)),                                   # ffn in
        nrm((FFN, HIDDEN)), nrm((1, HIDDEN)),                                # ffn out
        jnp.ones((1, HIDDEN), jnp.float32), jnp.zeros((1, HIDDEN), jnp.float32),  # ln2
    ]
    # head (pooler + MLP + fc)
    params["head"] = [
        nrm((HIDDEN, HIDDEN)), nrm((1, HIDDEN)),                 # pooler
        nrm((HIDDEN, 2 * INTER_MLP)), nrm((1, 2 * INTER_MLP)),   # MLP Linear 1
        nrm((2 * INTER_MLP, INTER_MLP)), nrm((1, INTER_MLP)),    # MLP Linear 2
        nrm((INTER_MLP, 1)), nrm((TABULAR, 1)), nrm((1, 1)),     # fc split + bias
    ]
    return params


def pack_params(params):
    """Host-side (numpy, once) packing of all parameters into two lane-dense
    f32 slabs -> 2 weight DMAs total instead of ~20."""
    (wq, bq, wk, bk, wv, bv, wo, bo, g1, be1,
     wf1, bf1, wf2, bf2, g2, be2) = params["layer"]
    wp, bp, w1, b1, w2, b2, wfce, wfct, bfc = params["head"]

    def asnp(a):
        return np.asarray(a, np.float32)

    # fused qkv weight, columns ordered [q/k/v, head, head_dim]
    wqkv = np.concatenate(
        [np.concatenate([asnp(w[h]) for h in range(NUM_HEADS)], axis=1)
         for w in (wq, wk, wv)], axis=1)                                # (H, 96)
    bqkv = np.concatenate(
        [np.concatenate([asnp(b[h]) for h in range(NUM_HEADS)], axis=1)
         for b in (bq, bk, bv)], axis=1)                                # (1, 96)
    wo_f = np.concatenate([asnp(wo[h]) for h in range(NUM_HEADS)], axis=0)  # (32, H)

    # combined word+type embedding table: row (t*VOCAB + w) = word[w] + type[t]
    emb_comb = (np.tile(asnp(params["word_emb"]), (TYPE_VOCAB, 1))
                + np.repeat(asnp(params["type_emb"]), VOCAB, axis=0))   # (128, H)
    pos_tiled = np.tile(asnp(params["pos_emb"]), (NUM_CHUNKS, 1))       # (CS, H)

    weight_blocks = [
        ("emb", emb_comb), ("pos", pos_tiled), ("wqkv", wqkv), ("wo", wo_f),
        ("wf1", asnp(wf1)), ("wf2", asnp(wf2)), ("wp", asnp(wp)),
        ("w1", asnp(w1)), ("w2", asnp(w2)),
    ]
    woff, rows, off = {}, [], 0
    for name, m in weight_blocks:
        k, ncol = m.shape
        kp = -(-k // 8) * 8                       # 8-row (sublane) aligned blocks
        blk = np.zeros((kp, LANES), np.float32)
        blk[:k, :ncol] = m
        woff[name] = (off, k, ncol)
        rows.append(blk)
        off += kp
    w_slab = jnp.asarray(np.concatenate(rows, axis=0))                  # (rows,128)

    vec_rows = [
        ("emb_ln_g", params["emb_ln_g"]), ("emb_ln_b", params["emb_ln_b"]),
        ("bqkv", bqkv), ("bo", bo), ("ln1_g", g1), ("ln1_b", be1),
        ("bf1", bf1), ("bf2", bf2), ("ln2_g", g2), ("ln2_b", be2),
        ("bp", bp), ("b1", b1), ("b2", b2),
        ("wfce", asnp(wfce).T), ("wfct", asnp(wfct).T), ("bfc", bfc),
    ]
    voff = {}
    vs = np.zeros((-(-len(vec_rows) // 8) * 8, LANES), np.float32)
    for i, (name, row) in enumerate(vec_rows):
        r = asnp(row).reshape(1, -1)
        voff[name] = (i, r.shape[1])
        vs[i, :r.shape[1]] = r[0]
    v_slab = jnp.asarray(vs)                                            # (16, 128)
    return w_slab, v_slab, woff, voff


# --------------------------- model forward (wrapper) ------------------------
def make_pooling_matrix(chunks_per_note):
    """Host-side glue matching the python int() chunk bookkeeping in PyTorch."""
    b = len(chunks_per_note)
    c = int(sum(chunks_per_note))
    step = np.repeat(np.arange(b), np.asarray(chunks_per_note, np.int64))
    p = np.zeros((b, c), np.float32)
    for j, i in enumerate(step):
        p[i, j] = 1.0 / float(chunks_per_note[i])
    return jnp.asarray(p)


def acu_multimodal_forward(packed, input_ids, token_type_ids, attention_mask,
                           tabular_x, chunks_per_note):
    w_slab, v_slab, woff, voff = packed
    # combined (type, word) id in [0, 128): in-kernel one-hot is lane-dense
    tok = (token_type_ids.astype(jnp.int32) * VOCAB
           + input_ids.astype(jnp.int32)).reshape(CS, 1)              # (CS, 1)
    mask = attention_mask.astype(jnp.float32)                         # (C, S)
    pool_mat = make_pooling_matrix(chunks_per_note)                   # (B, C)
    ptab = jnp.concatenate([pool_mat, tabular_x.astype(jnp.float32)], axis=1)
    return fused_forward(tok, mask, ptab, w_slab, v_slab, woff, voff)  # (B,)


# ------------------------------ pure-JAX reference ---------------------------
def embed(params, input_ids, token_type_ids):
    x = (params["word_emb"][input_ids]
         + params["pos_emb"][None, :, :]
         + params["type_emb"][token_type_ids])
    return _layer_norm(x, params["emb_ln_g"], params["emb_ln_b"])


def reference_forward(params, input_ids, token_type_ids, attention_mask,
                      tabular_x, chunks_per_note):
    x = embed(params, input_ids, token_type_ids)
    (wq, bq, wk, bk, wv, bv, wo, bo, g1, be1,
     wf1, bf1, wf2, bf2, g2, be2) = params["layer"]
    neg = (1.0 - attention_mask.astype(jnp.float32))[:, None, :] * (-1e9)
    scale = 1.0 / (HEAD_DIM ** 0.5)
    attn = jnp.zeros_like(x)
    for h in range(NUM_HEADS):
        qh = x @ wq[h] + bq[h]
        kh = x @ wk[h] + bk[h]
        vh = x @ wv[h] + bv[h]
        s = jnp.einsum("csd,ctd->cst", qh, kh) * scale + neg
        p = jax.nn.softmax(s, axis=-1)
        attn = attn + jnp.einsum("cst,ctd->csd", p, vh) @ wo[h]
    attn = attn + bo
    h1 = _layer_norm(x + attn, g1, be1)
    ff = _gelu(h1 @ wf1 + bf1) @ wf2 + bf2
    seq = _layer_norm(h1 + ff, g2, be2)

    wp, bp, w1, b1, w2, b2, wfce, wfct, bfc = params["head"]
    pooled = jnp.tanh(seq[:, 0, :] @ wp + bp)
    xx = make_pooling_matrix(chunks_per_note) @ pooled
    hh = jnp.maximum(xx @ w1 + b1, 0.0)
    hh = jnp.maximum(hh @ w2 + b2, 0.0)
    logit = hh @ wfce + tabular_x @ wfct + bfc
    return jax.nn.sigmoid(logit)[:, 0]


# ----------------------------------- main ------------------------------------
if __name__ == "__main__":
    key = jax.random.PRNGKey(0)
    kp, k1, k2, k3 = jax.random.split(key, 4)

    params = init_params(kp)
    packed = pack_params(params)          # host-side, once

    input_ids = jax.random.randint(k1, (NUM_CHUNKS, SEQ), 0, VOCAB, jnp.int32)
    token_type_ids = jax.random.randint(k2, (NUM_CHUNKS, SEQ), 0, TYPE_VOCAB,
                                        jnp.int32)
    attention_mask = np.ones((NUM_CHUNKS, SEQ), np.float32)
    attention_mask[-1, -3:] = 0.0                      # some padded tokens
    attention_mask = jnp.asarray(attention_mask)
    tabular_x = jax.random.normal(k3, (BATCH, TABULAR), jnp.float32)
    chunks = CHUNKS_PER_NOTE                           # host-side ints, as in PyTorch

    risk = acu_multimodal_forward(packed, input_ids, token_type_ids,
                                  attention_mask, tabular_x, chunks)
    risk = jax.block_until_ready(risk)

    ref = reference_forward(params, input_ids, token_type_ids,
                            attention_mask, tabular_x, chunks)
    ref = jax.block_until_ready(ref)

    assert risk.shape == (BATCH,)
    assert bool(jnp.all(jnp.isfinite(risk)))
    np.testing.assert_allclose(np.asarray(risk), np.asarray(ref),
                               rtol=2e-2, atol=2e-2)
    print("KERNEL_OK")
</pallas_src>

<mosaic_0001>
module attributes {stable_mosaic.version = 11 : i64} {
  func.func @kernel(%arg0: memref<32x1xi32, #tpu.memory_space<vmem>>, %arg1: memref<4x8xf32, #tpu.memory_space<vmem>>, %arg2: memref<2x12xf32, #tpu.memory_space<vmem>>, %arg3: memref<416x128xf32, #tpu.memory_space<vmem>>, %arg4: memref<16x128xf32, #tpu.memory_space<vmem>>, %arg5: memref<2x1xf32, #tpu.memory_space<vmem>>) attributes {dimension_semantics = [], scalar_prefetch = 0 : i64, scratch_operands = 0 : i64, tpu.core_type = #tpu.core_type<tc>} {
    %c0 = arith.constant 0 : index
    %c0_0 = arith.constant 0 : index
    %0 = vector.load %arg0[%c0, %c0_0] : memref<32x1xi32, #tpu.memory_space<vmem>>, vector<32x1xi32>
    %1 = tpu.iota {dimensions = array<i32: 1>} : vector<32x128xi32>
    %2 = vector.broadcast %0 : vector<32x1xi32> to vector<32x128xi32>
    %3 = arith.cmpi eq, %1, %2 : vector<32x128xi32>
    %4 = arith.extui %3 : vector<32x128xi1> to vector<32x128xi32>
    %5 = arith.sitofp %4 : vector<32x128xi32> to vector<32x128xf32>
    %c0_1 = arith.constant 0 : index
    %c0_2 = arith.constant 0 : index
    %6 = vector.load %arg3[%c0_1, %c0_2] : memref<416x128xf32, #tpu.memory_space<vmem>>, vector<128x32xf32>
    %cst = arith.constant dense<0.000000e+00> : vector<32x32xf32>
    %7 = tpu.matmul %5, %6, %cst {dimension_numbers = #tpu.dot_dimension_numbers<[1], [0], [0], [1], [0, 0, 1, 1], [], []>} : vector<32x128xf32>, vector<128x32xf32>, vector<32x32xf32> -> vector<32x32xf32>
    %c128 = arith.constant 128 : index
    %c0_3 = arith.constant 0 : index
    %8 = vector.load %arg3[%c128, %c0_3] : memref<416x128xf32, #tpu.memory_space<vmem>>, vector<32x32xf32>
    %9 = arith.addf %7, %8 : vector<32x32xf32>
    %c0_4 = arith.constant 0 : index
    %c0_5 = arith.constant 0 : index
    %10 = vector.load %arg4[%c0_4, %c0_5] : memref<16x128xf32, #tpu.memory_space<vmem>>, vector<1x32xf32>
    %c1 = arith.constant 1 : index
    %c0_6 = arith.constant 0 : index
    %11 = vector.load %arg4[%c1, %c0_6] : memref<16x128xf32, #tpu.memory_space<vmem>>, vector<1x32xf32>
    %cst_7 = arith.constant dense<0.000000e+00> : vector<32xf32>
    %12 = vector.multi_reduction <add>, %9, %cst_7 [1] : vector<32x32xf32> to vector<32xf32>
    %13 = vector.shape_cast %12 : vector<32xf32> to vector<32x1xf32>
    %cst_8 = arith.constant 3.200000e+01 : f32
    %14 = vector.broadcast %cst_8 : f32 to vector<32x1xf32>
    %15 = arith.divf %13, %14 : vector<32x1xf32>
    %16 = vector.broadcast %15 : vector<32x1xf32> to vector<32x32xf32>
    %17 = arith.subf %9, %16 : vector<32x32xf32>
    %18 = arith.mulf %17, %17 : vector<32x32xf32>
    %cst_9 = arith.constant dense<0.000000e+00> : vector<32xf32>
    %19 = vector.multi_reduction <add>, %18, %cst_9 [1] : vector<32x32xf32> to vector<32xf32>
    %20 = vector.shape_cast %19 : vector<32xf32> to vector<32x1xf32>
    %cst_10 = arith.constant 3.200000e+01 : f32
    %21 = vector.broadcast %cst_10 : f32 to vector<32x1xf32>
    %22 = arith.divf %20, %21 : vector<32x1xf32>
    %23 = vector.broadcast %15 : vector<32x1xf32> to vector<32x32xf32>
    %24 = arith.subf %9, %23 : vector<32x32xf32>
    %cst_11 = arith.constant 9.99999996E-13 : f32
    %25 = vector.broadcast %cst_11 : f32 to vector<32x1xf32>
    %26 = arith.addf %22, %25 : vector<32x1xf32>
    %27 = math.rsqrt %26 : vector<32x1xf32>
    %28 = vector.broadcast %27 : vector<32x1xf32> to vector<32x32xf32>
    %29 = arith.mulf %24, %28 : vector<32x32xf32>
    %30 = vector.broadcast %10 : vector<1x32xf32> to vector<32x32xf32>
    %31 = arith.mulf %29, %30 : vector<32x32xf32>
    %32 = vector.broadcast %11 : vector<1x32xf32> to vector<32x32xf32>
    %33 = arith.addf %31, %32 : vector<32x32xf32>
    %c160 = arith.constant 160 : index
    %c0_12 = arith.constant 0 : index
    %34 = vector.load %arg3[%c160, %c0_12] : memref<416x128xf32, #tpu.memory_space<vmem>>, vector<32x96xf32>
    %cst_13 = arith.constant dense<0.000000e+00> : vector<32x96xf32>
    %35 = tpu.matmul %33, %34, %cst_13 {dimension_numbers = #tpu.dot_dimension_numbers<[1], [0], [0], [1], [0, 0, 1, 1], [], []>} : vector<32x32xf32>, vector<32x96xf32>, vector<32x96xf32> -> vector<32x96xf32>
    %c2 = arith.constant 2 : index
    %c0_14 = arith.constant 0 : index
    %36 = vector.load %arg4[%c2, %c0_14] : memref<16x128xf32, #tpu.memory_space<vmem>>, vector<1x96xf32>
    %37 = vector.broadcast %36 : vector<1x96xf32> to vector<32x96xf32>
    %38 = arith.addf %35, %37 : vector<32x96xf32>
    %39 = vector.extract_strided_slice %38 {offsets = [0, 0], sizes = [32, 16], strides = [1, 1]} : vector<32x96xf32> to vector<32x16xf32>
    %40 = vector.shape_cast %39 : vector<32x16xf32> to vector<4x8x16xf32>
    %41 = vector.extract_strided_slice %38 {offsets = [0, 16], sizes = [32, 16], strides = [1, 1]} : vector<32x96xf32> to vector<32x16xf32>
    %42 = vector.shape_cast %41 : vector<32x16xf32> to vector<4x8x16xf32>
    %43 = tpu.concatenate %40, %42 in 0 : vector<4x8x16xf32>, vector<4x8x16xf32> -> vector<8x8x16xf32>
    %44 = vector.extract_strided_slice %38 {offsets = [0, 32], sizes = [32, 16], strides = [1, 1]} : vector<32x96xf32> to vector<32x16xf32>
    %45 = vector.shape_cast %44 : vector<32x16xf32> to vector<4x8x16xf32>
    %46 = vector.extract_strided_slice %38 {offsets = [0, 48], sizes = [32, 16], strides = [1, 1]} : vector<32x96xf32> to vector<32x16xf32>
    %47 = vector.shape_cast %46 : vector<32x16xf32> to vector<4x8x16xf32>
    %48 = tpu.concatenate %45, %47 in 0 : vector<4x8x16xf32>, vector<4x8x16xf32> -> vector<8x8x16xf32>
    %49 = vector.extract_strided_slice %38 {offsets = [0, 64], sizes = [32, 16], strides = [1, 1]} : vector<32x96xf32> to vector<32x16xf32>
    %50 = vector.shape_cast %49 : vector<32x16xf32> to vector<4x8x16xf32>
    %51 = vector.extract_strided_slice %38 {offsets = [0, 80], sizes = [32, 16], strides = [1, 1]} : vector<32x96xf32> to vector<32x16xf32>
    %52 = vector.shape_cast %51 : vector<32x16xf32> to vector<4x8x16xf32>
    %53 = tpu.concatenate %50, %52 in 0 : vector<4x8x16xf32>, vector<4x8x16xf32> -> vector<8x8x16xf32>
    %c0_15 = arith.constant 0 : index
    %c0_16 = arith.constant 0 : index
    %54 = vector.load %arg1[%c0_15, %c0_16] : memref<4x8xf32, #tpu.memory_space<vmem>>, vector<4x8xf32>
    %cst_17 = arith.constant 1.000000e+00 : f32
    %55 = vector.broadcast %cst_17 : f32 to vector<4x8xf32>
    %56 = arith.subf %55, %54 : vector<4x8xf32>
    %cst_18 = arith.constant -1.000000e+09 : f32
    %57 = vector.broadcast %cst_18 : f32 to vector<4x8xf32>
    %58 = arith.mulf %56, %57 : vector<4x8xf32>
    %59 = vector.shape_cast %58 : vector<4x8xf32> to vector<4x1x8xf32>
    %60 = tpu.concatenate %59, %59 in 0 : vector<4x1x8xf32>, vector<4x1x8xf32> -> vector<8x1x8xf32>
    "tpu.trace_start"() <{level = 10 : i32, message = "bsd,btd->bst"}> : () -> ()
    %cst_19 = arith.constant dense<0.000000e+00> : vector<8x8x8xf32>
    %61 = tpu.matmul %43, %48, %cst_19 {dimension_numbers = #tpu.dot_dimension_numbers<[2], [2], [1], [1], [0, 0, 0, 1, 1, 1], [0], [0]>} : vector<8x8x16xf32>, vector<8x8x16xf32>, vector<8x8x8xf32> -> vector<8x8x8xf32>
    "tpu.trace_stop"() : () -> ()
    %cst_20 = arith.constant 2.500000e-01 : f32
    %62 = vector.broadcast %cst_20 : f32 to vector<8x8x8xf32>
    %63 = arith.mulf %61, %62 : vector<8x8x8xf32>
    %64 = vector.broadcast %60 : vector<8x1x8xf32> to vector<8x8x8xf32>
    %65 = arith.addf %63, %64 : vector<8x8x8xf32>
    %cst_21 = arith.constant dense<0xFF800000> : vector<8x8xf32>
    %66 = vector.multi_reduction <maximumf>, %65, %cst_21 [2] : vector<8x8x8xf32> to vector<8x8xf32>
    %67 = vector.shape_cast %66 : vector<8x8xf32> to vector<8x8x1xf32>
    %68 = vector.broadcast %67 : vector<8x8x1xf32> to vector<8x8x8xf32>
    %69 = arith.subf %65, %68 : vector<8x8x8xf32>
    %70 = math.exp %69 : vector<8x8x8xf32>
    %cst_22 = arith.constant dense<0.000000e+00> : vector<8x8xf32>
    %71 = vector.multi_reduction <add>, %70, %cst_22 [2] : vector<8x8x8xf32> to vector<8x8xf32>
    %72 = vector.shape_cast %71 : vector<8x8xf32> to vector<8x8x1xf32>
    %73 = tpu.reciprocal %72 {approx = true} : vector<8x8x1xf32> -> vector<8x8x1xf32>
    %74 = vector.broadcast %73 : vector<8x8x1xf32> to vector<8x8x8xf32>
    %75 = arith.mulf %70, %74 : vector<8x8x8xf32>
    "tpu.trace_start"() <{level = 10 : i32, message = "bst,btd->bsd"}> : () -> ()
    %cst_23 = arith.constant dense<0.000000e+00> : vector<8x8x16xf32>
    %76 = tpu.matmul %75, %53, %cst_23 {dimension_numbers = #tpu.dot_dimension_numbers<[2], [1], [1], [2], [0, 0, 0, 1, 1, 2], [0], [0]>} : vector<8x8x8xf32>, vector<8x8x16xf32>, vector<8x8x16xf32> -> vector<8x8x16xf32>
    "tpu.trace_stop"() : () -> ()
    %77 = vector.extract_strided_slice %76 {offsets = [0, 0, 0], sizes = [4, 8, 16], strides = [1, 1, 1]} : vector<8x8x16xf32> to vector<4x8x16xf32>
    %78 = vector.extract_strided_slice %76 {offsets = [4, 0, 0], sizes = [4, 8, 16], strides = [1, 1, 1]} : vector<8x8x16xf32> to vector<4x8x16xf32>
    %79 = tpu.concatenate %77, %78 in 2 : vector<4x8x16xf32>, vector<4x8x16xf32> -> vector<4x8x32xf32>
    %80 = vector.shape_cast %79 : vector<4x8x32xf32> to vector<32x32xf32>
    %c192 = arith.constant 192 : index
    %c0_24 = arith.constant 0 : index
    %81 = vector.load %arg3[%c192, %c0_24] : memref<416x128xf32, #tpu.memory_space<vmem>>, vector<32x32xf32>
    %cst_25 = arith.constant dense<0.000000e+00> : vector<32x32xf32>
    %82 = tpu.matmul %80, %81, %cst_25 {dimension_numbers = #tpu.dot_dimension_numbers<[1], [0], [0], [1], [0, 0, 1, 1], [], []>} : vector<32x32xf32>, vector<32x32xf32>, vector<32x32xf32> -> vector<32x32xf32>
    %c3 = arith.constant 3 : index
    %c0_26 = arith.constant 0 : index
    %83 = vector.load %arg4[%c3, %c0_26] : memref<16x128xf32, #tpu.memory_space<vmem>>, vector<1x32xf32>
    %84 = vector.broadcast %83 : vector<1x32xf32> to vector<32x32xf32>
    %85 = arith.addf %82, %84 : vector<32x32xf32>
    %86 = arith.addf %33, %85 : vector<32x32xf32>
    %c4 = arith.constant 4 : index
    %c0_27 = arith.constant 0 : index
    %87 = vector.load %arg4[%c4, %c0_27] : memref<16x128xf32, #tpu.memory_space<vmem>>, vector<1x32xf32>
    %c5 = arith.constant 5 : index
    %c0_28 = arith.constant 0 : index
    %88 = vector.load %arg4[%c5, %c0_28] : memref<16x128xf32, #tpu.memory_space<vmem>>, vector<1x32xf32>
    %cst_29 = arith.constant dense<0.000000e+00> : vector<32xf32>
    %89 = vector.multi_reduction <add>, %86, %cst_29 [1] : vector<32x32xf32> to vector<32xf32>
    %90 = vector.shape_cast %89 : vector<32xf32> to vector<32x1xf32>
    %cst_30 = arith.constant 3.200000e+01 : f32
    %91 = vector.broadcast %cst_30 : f32 to vector<32x1xf32>
    %92 = arith.divf %90, %91 : vector<32x1xf32>
    %93 = vector.broadcast %92 : vector<32x1xf32> to vector<32x32xf32>
    %94 = arith.subf %86, %93 : vector<32x32xf32>
    %95 = arith.mulf %94, %94 : vector<32x32xf32>
    %cst_31 = arith.constant dense<0.000000e+00> : vector<32xf32>
    %96 = vector.multi_reduction <add>, %95, %cst_31 [1] : vector<32x32xf32> to vector<32xf32>
    %97 = vector.shape_cast %96 : vector<32xf32> to vector<32x1xf32>
    %cst_32 = arith.constant 3.200000e+01 : f32
    %98 = vector.broadcast %cst_32 : f32 to vector<32x1xf32>
    %99 = arith.divf %97, %98 : vector<32x1xf32>
    %100 = vector.broadcast %92 : vector<32x1xf32> to vector<32x32xf32>
    %101 = arith.subf %86, %100 : vector<32x32xf32>
    %cst_33 = arith.constant 9.99999996E-13 : f32
    %102 = vector.broadcast %cst_33 : f32 to vector<32x1xf32>
    %103 = arith.addf %99, %102 : vector<32x1xf32>
    %104 = math.rsqrt %103 : vector<32x1xf32>
    %105 = vector.broadcast %104 : vector<32x1xf32> to vector<32x32xf32>
    %106 = arith.mulf %101, %105 : vector<32x32xf32>
    %107 = vector.broadcast %87 : vector<1x32xf32> to vector<32x32xf32>
    %108 = arith.mulf %106, %107 : vector<32x32xf32>
    %109 = vector.broadcast %88 : vector<1x32xf32> to vector<32x32xf32>
    %110 = arith.addf %108, %109 : vector<32x32xf32>
    %c224 = arith.constant 224 : index
    %c0_34 = arith.constant 0 : index
    %111 = vector.load %arg3[%c224, %c0_34] : memref<416x128xf32, #tpu.memory_space<vmem>>, vector<32x64xf32>
    %cst_35 = arith.constant dense<0.000000e+00> : vector<32x64xf32>
    %112 = tpu.matmul %110, %111, %cst_35 {dimension_numbers = #tpu.dot_dimension_numbers<[1], [0], [0], [1], [0, 0, 1, 1], [], []>} : vector<32x32xf32>, vector<32x64xf32>, vector<32x64xf32> -> vector<32x64xf32>
    %c6 = arith.constant 6 : index
    %c0_36 = arith.constant 0 : index
    %113 = vector.load %arg4[%c6, %c0_36] : memref<16x128xf32, #tpu.memory_space<vmem>>, vector<1x64xf32>
    %114 = vector.broadcast %113 : vector<1x64xf32> to vector<32x64xf32>
    %115 = arith.addf %112, %114 : vector<32x64xf32>
    %cst_37 = arith.constant 5.000000e-01 : f32
    %116 = vector.broadcast %cst_37 : f32 to vector<32x64xf32>
    %117 = arith.mulf %116, %115 : vector<32x64xf32>
    %cst_38 = arith.constant 4.471500e-02 : f32
    %118 = vector.broadcast %cst_38 : f32 to vector<32x64xf32>
    %119 = arith.mulf %118, %115 : vector<32x64xf32>
    %120 = arith.mulf %119, %115 : vector<32x64xf32>
    %121 = arith.mulf %120, %115 : vector<32x64xf32>
    %122 = arith.addf %115, %121 : vector<32x64xf32>
    %cst_39 = arith.constant 0.797884583 : f32
    %123 = vector.broadcast %cst_39 : f32 to vector<32x64xf32>
    %124 = arith.mulf %123, %122 : vector<32x64xf32>
    %125 = math.tanh %124 : vector<32x64xf32>
    %cst_40 = arith.constant 1.000000e+00 : f32
    %126 = vector.broadcast %cst_40 : f32 to vector<32x64xf32>
    %127 = arith.addf %126, %125 : vector<32x64xf32>
    %128 = arith.mulf %117, %127 : vector<32x64xf32>
    %c256 = arith.constant 256 : index
    %c0_41 = arith.constant 0 : index
    %129 = vector.load %arg3[%c256, %c0_41] : memref<416x128xf32, #tpu.memory_space<vmem>>, vector<64x32xf32>
    %cst_42 = arith.constant dense<0.000000e+00> : vector<32x32xf32>
    %130 = tpu.matmul %128, %129, %cst_42 {dimension_numbers = #tpu.dot_dimension_numbers<[1], [0], [0], [1], [0, 0, 1, 1], [], []>} : vector<32x64xf32>, vector<64x32xf32>, vector<32x32xf32> -> vector<32x32xf32>
    %c7 = arith.constant 7 : index
    %c0_43 = arith.constant 0 : index
    %131 = vector.load %arg4[%c7, %c0_43] : memref<16x128xf32, #tpu.memory_space<vmem>>, vector<1x32xf32>
    %132 = vector.broadcast %131 : vector<1x32xf32> to vector<32x32xf32>
    %133 = arith.addf %130, %132 : vector<32x32xf32>
    %134 = arith.addf %110, %133 : vector<32x32xf32>
    %c8 = arith.constant 8 : index
    %c0_44 = arith.constant 0 : index
    %135 = vector.load %arg4[%c8, %c0_44] : memref<16x128xf32, #tpu.memory_space<vmem>>, vector<1x32xf32>
    %c9 = arith.constant 9 : index
    %c0_45 = arith.constant 0 : index
    %136 = vector.load %arg4[%c9, %c0_45] : memref<16x128xf32, #tpu.memory_space<vmem>>, vector<1x32xf32>
    %cst_46 = arith.constant dense<0.000000e+00> : vector<32xf32>
    %137 = vector.multi_reduction <add>, %134, %cst_46 [1] : vector<32x32xf32> to vector<32xf32>
    %138 = vector.shape_cast %137 : vector<32xf32> to vector<32x1xf32>
    %cst_47 = arith.constant 3.200000e+01 : f32
    %139 = vector.broadcast %cst_47 : f32 to vector<32x1xf32>
    %140 = arith.divf %138, %139 : vector<32x1xf32>
    %141 = vector.broadcast %140 : vector<32x1xf32> to vector<32x32xf32>
    %142 = arith.subf %134, %141 : vector<32x32xf32>
    %143 = arith.mulf %142, %142 : vector<32x32xf32>
    %cst_48 = arith.constant dense<0.000000e+00> : vector<32xf32>
    %144 = vector.multi_reduction <add>, %143, %cst_48 [1] : vector<32x32xf32> to vector<32xf32>
    %145 = vector.shape_cast %144 : vector<32xf32> to vector<32x1xf32>
    %cst_49 = arith.constant 3.200000e+01 : f32
    %146 = vector.broadcast %cst_49 : f32 to vector<32x1xf32>
    %147 = arith.divf %145, %146 : vector<32x1xf32>
    %148 = vector.broadcast %140 : vector<32x1xf32> to vector<32x32xf32>
    %149 = arith.subf %134, %148 : vector<32x32xf32>
    %cst_50 = arith.constant 9.99999996E-13 : f32
    %150 = vector.broadcast %cst_50 : f32 to vector<32x1xf32>
    %151 = arith.addf %147, %150 : vector<32x1xf32>
    %152 = math.rsqrt %151 : vector<32x1xf32>
    %153 = vector.broadcast %152 : vector<32x1xf32> to vector<32x32xf32>
    %154 = arith.mulf %149, %153 : vector<32x32xf32>
    %155 = vector.broadcast %135 : vector<1x32xf32> to vector<32x32xf32>
    %156 = arith.mulf %154, %155 : vector<32x32xf32>
    %157 = vector.broadcast %136 : vector<1x32xf32> to vector<32x32xf32>
    %158 = arith.addf %156, %157 : vector<32x32xf32>
    %159 = vector.shape_cast %158 : vector<32x32xf32> to vector<4x8x32xf32>
    %160 = vector.extract_strided_slice %159 {offsets = [0, 0, 0], sizes = [4, 1, 32], strides = [1, 1, 1]} : vector<4x8x32xf32> to vector<4x1x32xf32>
    %161 = vector.shape_cast %160 : vector<4x1x32xf32> to vector<4x32xf32>
    %c320 = arith.constant 320 : index
    %c0_51 = arith.constant 0 : index
    %162 = vector.load %arg3[%c320, %c0_51] : memref<416x128xf32, #tpu.memory_space<vmem>>, vector<32x32xf32>
    %cst_52 = arith.constant dense<0.000000e+00> : vector<4x32xf32>
    %163 = tpu.matmul %161, %162, %cst_52 {dimension_numbers = #tpu.dot_dimension_numbers<[1], [0], [0], [1], [0, 0, 1, 1], [], []>} : vector<4x32xf32>, vector<32x32xf32>, vector<4x32xf32> -> vector<4x32xf32>
    %c10 = arith.constant 10 : index
    %c0_53 = arith.constant 0 : index
    %164 = vector.load %arg4[%c10, %c0_53] : memref<16x128xf32, #tpu.memory_space<vmem>>, vector<1x32xf32>
    %165 = vector.broadcast %164 : vector<1x32xf32> to vector<4x32xf32>
    %166 = arith.addf %163, %165 : vector<4x32xf32>
    %167 = math.tanh %166 : vector<4x32xf32>
    %c0_54 = arith.constant 0 : index
    %c0_55 = arith.constant 0 : index
    %168 = vector.load %arg2[%c0_54, %c0_55] : memref<2x12xf32, #tpu.memory_space<vmem>>, vector<2x12xf32>
    %169 = vector.extract_strided_slice %168 {offsets = [0, 0], sizes = [2, 4], strides = [1, 1]} : vector<2x12xf32> to vector<2x4xf32>
    %170 = vector.extract_strided_slice %168 {offsets = [0, 4], sizes = [2, 8], strides = [1, 1]} : vector<2x12xf32> to vector<2x8xf32>
    %cst_56 = arith.constant dense<0.000000e+00> : vector<2x32xf32>
    %171 = tpu.matmul %169, %167, %cst_56 {dimension_numbers = #tpu.dot_dimension_numbers<[1], [0], [0], [1], [0, 0, 1, 1], [], []>} : vector<2x4xf32>, vector<4x32xf32>, vector<2x32xf32> -> vector<2x32xf32>
    %c352 = arith.constant 352 : index
    %c0_57 = arith.constant 0 : index
    %172 = vector.load %arg3[%c352, %c0_57] : memref<416x128xf32, #tpu.memory_space<vmem>>, vector<32x32xf32>
    %cst_58 = arith.constant dense<0.000000e+00> : vector<2x32xf32>
    %173 = tpu.matmul %171, %172, %cst_58 {dimension_numbers = #tpu.dot_dimension_numbers<[1], [0], [0], [1], [0, 0, 1, 1], [], []>} : vector<2x32xf32>, vector<32x32xf32>, vector<2x32xf32> -> vector<2x32xf32>
    %c11 = arith.constant 11 : index
    %c0_59 = arith.constant 0 : index
    %174 = vector.load %arg4[%c11, %c0_59] : memref<16x128xf32, #tpu.memory_space<vmem>>, vector<1x32xf32>
    %175 = vector.broadcast %174 : vector<1x32xf32> to vector<2x32xf32>
    %176 = arith.addf %173, %175 : vector<2x32xf32>
    %cst_60 = arith.constant 0.000000e+00 : f32
    %177 = vector.broadcast %cst_60 : f32 to vector<2x32xf32>
    %178 = arith.maximumf %176, %177 : vector<2x32xf32>
    %c384 = arith.constant 384 : index
    %c0_61 = arith.constant 0 : index
    %179 = vector.load %arg3[%c384, %c0_61] : memref<416x128xf32, #tpu.memory_space<vmem>>, vector<32x16xf32>
    %cst_62 = arith.constant dense<0.000000e+00> : vector<2x16xf32>
    %180 = tpu.matmul %178, %179, %cst_62 {dimension_numbers = #tpu.dot_dimension_numbers<[1], [0], [0], [1], [0, 0, 1, 1], [], []>} : vector<2x32xf32>, vector<32x16xf32>, vector<2x16xf32> -> vector<2x16xf32>
    %c12 = arith.constant 12 : index
    %c0_63 = arith.constant 0 : index
    %181 = vector.load %arg4[%c12, %c0_63] : memref<16x128xf32, #tpu.memory_space<vmem>>, vector<1x16xf32>
    %182 = vector.broadcast %181 : vector<1x16xf32> to vector<2x16xf32>
    %183 = arith.addf %180, %182 : vector<2x16xf32>
    %cst_64 = arith.constant 0.000000e+00 : f32
    %184 = vector.broadcast %cst_64 : f32 to vector<2x16xf32>
    %185 = arith.maximumf %183, %184 : vector<2x16xf32>
    %c13 = arith.constant 13 : index
    %c0_65 = arith.constant 0 : index
    %186 = vector.load %arg4[%c13, %c0_65] : memref<16x128xf32, #tpu.memory_space<vmem>>, vector<1x16xf32>
    %187 = vector.broadcast %186 : vector<1x16xf32> to vector<2x16xf32>
    %188 = arith.mulf %185, %187 : vector<2x16xf32>
    %cst_66 = arith.constant dense<0.000000e+00> : vector<2xf32>
    %189 = vector.multi_reduction <add>, %188, %cst_66 [1] : vector<2x16xf32> to vector<2xf32>
    %190 = vector.shape_cast %189 : vector<2xf32> to vector<2x1xf32>
    %c14 = arith.constant 14 : index
    %c0_67 = arith.constant 0 : index
    %191 = vector.load %arg4[%c14, %c0_67] : memref<16x128xf32, #tpu.memory_space<vmem>>, vector<1x8xf32>
    %192 = vector.broadcast %191 : vector<1x8xf32> to vector<2x8xf32>
    %193 = arith.mulf %170, %192 : vector<2x8xf32>
    %cst_68 = arith.constant dense<0.000000e+00> : vector<2xf32>
    %194 = vector.multi_reduction <add>, %193, %cst_68 [1] : vector<2x8xf32> to vector<2xf32>
    %195 = vector.shape_cast %194 : vector<2xf32> to vector<2x1xf32>
    %196 = arith.addf %190, %195 : vector<2x1xf32>
    %c15 = arith.constant 15 : index
    %c0_69 = arith.constant 0 : index
    %197 = vector.load %arg4[%c15, %c0_69] : memref<16x128xf32, #tpu.memory_space<vmem>>, vector<1x1xf32>
    %198 = vector.broadcast %197 : vector<1x1xf32> to vector<2x1xf32>
    %199 = arith.addf %196, %198 : vector<2x1xf32>
    %cst_70 = arith.constant 0.000000e+00 : f32
    %200 = vector.broadcast %cst_70 : f32 to vector<2x1xf32>
    %201 = arith.subf %200, %199 : vector<2x1xf32>
    %202 = math.exp %201 : vector<2x1xf32>
    %cst_71 = arith.constant 1.000000e+00 : f32
    %203 = vector.broadcast %cst_71 : f32 to vector<2x1xf32>
    %204 = arith.addf %203, %202 : vector<2x1xf32>
    %cst_72 = arith.constant 1.000000e+00 : f32
    %205 = vector.broadcast %cst_72 : f32 to vector<2x1xf32>
    %206 = arith.divf %205, %204 : vector<2x1xf32>
    %c0_73 = arith.constant 0 : index
    %c0_74 = arith.constant 0 : index
    %207 = vector.load %arg5[%c0_73, %c0_74] : memref<2x1xf32, #tpu.memory_space<vmem>>, vector<2x1xf32>
    tpu.vector_store %arg5[%c0_73, %c0_74], %206 {strides = array<i32>} : memref<2x1xf32, #tpu.memory_space<vmem>>, vector<2x1xf32>,
    return
  }
}

</mosaic_0001>

<llo_original>
// kernel: tpu_custom_call.1
$region0: #{tpu_custom_call.1}
  #allocation0 [shape = 'u32[]', space=smem, size = 0x4, offset = 0x4, fixed_abs, tag = 'smem constant byte address 0x4 - core index']
  #allocation1 [shape = 'u32[144,128]{1,0:T(1,128)}', space=vmem, size = 0x12000, scoped, tag = 'internal scratch']
  %s0 = inlined_call_operand.vmem [shape: s32[32,1], index: 0, kind: input, shape index: {}]
  %s1 = inlined_call_operand.vmem [shape: f32[4,8], index: 1, kind: input, shape index: {}]
  %s2 = inlined_call_operand.vmem [shape: f32[2,12], index: 2, kind: input, shape index: {}]
  %s3 = inlined_call_operand.hbm [shape: f32[416,128], index: 3, kind: input, shape index: {}]
  %s4 = inlined_call_operand.vmem [shape: f32[16,128], index: 4, kind: input, shape index: {}]
  %s5 = inlined_call_operand.vmem [shape: f32[2,1], index: 5, kind: output, shape index: {}]
  %s6 = sld [smem:[#allocation0]]
  $region34: #{tpu_custom_call.1} parent=0
    _
  %s8 = ssub.s32 1, %s6
  %s9 = scalar_select 0, %s8, %s6
  $region1: #{tpu_custom_call.1} parent=0
    #allocation2 [shape = 'u8[212992]{0}', space=vmem, size = 0x34000, scoped, tag = 'input window, operand 3, single buffered']
    #allocation3 [shape = 's32[1]{0}', space=sflag, size = 0x4, scoped, tag = 'scoped memory for tpu_custom_call.1']
    %10 = vsyncpa [#allocation3], 0
    // Predicated region
    $region2: #{tpu_custom_call.1} parent=1 // pred_check
      _
    $region3: #{tpu_custom_call.1} parent=1 // pred_check_branch
      %12 = sbr.rel (0) target = $region5
    $region4: #{tpu_custom_call.1} parent=1 // pred_region
      _
    $region5: #{tpu_custom_call.1} parent=1 // pred_fallthru
      _
    // Predicated region
    $region6: #{tpu_custom_call.1} parent=1 // pred_check
      _
    $region7: #{tpu_custom_call.1} parent=1 // pred_check_branch
      %14 = sbr.rel (0) target = $region9
    $region8: #{tpu_custom_call.1} parent=1 // pred_region
      _
    $region9: #{tpu_custom_call.1} parent=1 // pred_fallthru
      _
    // Predicated region
    $region10: #{tpu_custom_call.1} parent=1 // pred_check
      _
    $region11: #{tpu_custom_call.1} parent=1 // pred_check_branch
      %16 = sbr.rel (0) target = $region13
    $region12: #{tpu_custom_call.1} parent=1 // pred_region
      _
    $region13: #{tpu_custom_call.1} parent=1 // pred_fallthru
      _
    // Predicated region
    $region14: #{tpu_custom_call.1} parent=1 // pred_check
      _
    $region15: #{tpu_custom_call.1} parent=1 // pred_check_branch
      %18 = sbr.rel (0) target = $region17
    $region16: #{tpu_custom_call.1} parent=1 // pred_region
      %s20 = ssub.s32 6656, 6656
      %21 = vsyncadd [#allocation3], %s20
      %s22 = sshll.u32 [#allocation2], 4
      %s23 = int_to_ptr.vmem [resolvable:$true] %s22
      %28 = dma.hbm_to_vmem [thread:$0]  %s3, 6656, %s23, [#allocation3], 128, 128, 8
    $region17: #{tpu_custom_call.1} parent=1 // pred_fallthru
      _
    // Predicated region
    $region18: #{tpu_custom_call.1} parent=1 // pred_check
      _
    $region19: #{tpu_custom_call.1} parent=1 // pred_check_branch
      %30 = sbr.rel (0) target = $region21
    $region20: #{tpu_custom_call.1} parent=1 // pred_region
      _
    $region21: #{tpu_custom_call.1} parent=1 // pred_fallthru
      _
    // Predicated region
    $region22: #{tpu_custom_call.1} parent=1 // pred_check
      _
    $region23: #{tpu_custom_call.1} parent=1 // pred_check_branch
      %32 = sbr.rel (0) target = $region25
    $region24: #{tpu_custom_call.1} parent=1 // pred_region
      %33 = dma.done [#allocation3], 6656
    $region25: #{tpu_custom_call.1} parent=1 // pred_fallthru
      _
    %v34 = vld [vmem:[%s0] sm:$0xff]
    %v35 = vld [vmem:[%s0 + $0x8] sm:$0xff]
    %v36 = vld [vmem:[%s0 + $0x10] sm:$0xff]
    %v37 = vld [vmem:[%s0 + $0x18] sm:$0xff]
    %v38 = vlaneseq
    %v39 = vand.u32 %v38, 127
    %40 = vset.pattern.permute.xlu0 0
    %41 = vperm.xlu0 %40, %v34
    %v42 = vpop.permute.xlu0 %41
    %43 = vset.pattern.permute.xlu0 0
    %44 = vperm.xlu0 %43, %v35
    %v45 = vpop.permute.xlu0 %44
    %46 = vset.pattern.permute.xlu0 0
    %47 = vperm.xlu0 %46, %v36
    %v48 = vpop.permute.xlu0 %47
    %49 = vset.pattern.permute.xlu0 0
    %50 = vperm.xlu0 %49, %v37
    %v51 = vpop.permute.xlu0 %50
    %vm52 = vcmp.eq.s32.totalorder %v39, %v42
    %vm53 = vcmp.eq.s32.totalorder %v39, %v45
    %vm54 = vcmp.eq.s32.totalorder %v39, %v48
    %vm55 = vcmp.eq.s32.totalorder %v39, %v51
    %v56 = vsel %vm52, 1, 0
    %v57 = vsel %vm53, 1, 0
    %v58 = vsel %vm54, 1, 0
    %v59 = vsel %vm55, 1, 0
    %v60 = vcvt.s32.f32 %v56
    %v61 = vcvt.s32.f32 %v57
    %v62 = vcvt.s32.f32 %v58
    %v63 = vcvt.s32.f32 %v59
    %v64 = vld [vmem:[#allocation2] sm:$0xff]
    %v65 = vld [vmem:[#allocation2 + $0x8] sm:$0xff]
    %v66 = vld [vmem:[#allocation2 + $0x10] sm:$0xff]
    %v67 = vld [vmem:[#allocation2 + $0x18] sm:$0xff]
    %v68 = vld [vmem:[#allocation2 + $0x20] sm:$0xff]
    %v69 = vld [vmem:[#allocation2 + $0x28] sm:$0xff]
    %v70 = vld [vmem:[#allocation2 + $0x30] sm:$0xff]
    %v71 = vld [vmem:[#allocation2 + $0x38] sm:$0xff]
    %v72 = vld [vmem:[#allocation2 + $0x40] sm:$0xff]
    %v73 = vld [vmem:[#allocation2 + $0x48] sm:$0xff]
    %v74 = vld [vmem:[#allocation2 + $0x50] sm:$0xff]
    %v75 = vld [vmem:[#allocation2 + $0x58] sm:$0xff]
    %v76 = vld [vmem:[#allocation2 + $0x60] sm:$0xff]
    %v77 = vld [vmem:[#allocation2 + $0x68] sm:$0xff]
    %v78 = vld [vmem:[#allocation2 + $0x70] sm:$0xff]
    %v79 = vld [vmem:[#allocation2 + $0x78] sm:$0xff]
    %v80 = vld [vmem:[#allocation2 + $0x80] sm:$0xff]
    %v81 = vld [vmem:[#allocation2 + $0x88] sm:$0xff]
    %v82 = vld [vmem:[#allocation2 + $0x90] sm:$0xff]
    %v83 = vld [vmem:[#allocation2 + $0x98] sm:$0xff]
    %84 = vmatprep.subr.mxu0 0.0
    %85 = vmatpush1.msra.mxu0 %v64
    %86 = vmatprep.subr.mxu0 0.0
    %87 = vmatpush1.msra.mxu0 %v65
    %88 = vmatprep.subr.mxu0 0.0
    %89 = vmatpush1.msra.mxu0 %v66
    %90 = vmatprep.subr.mxu0 0.0
    %91 = vmatpush1.msra.mxu0 %v67
    %92 = vmatprep.subr.mxu0 0.0
    %93 = vmatpush1.msra.mxu0 %v68
    %94 = vmatprep.subr.mxu0 0.0
    %95 = vmatpush1.msra.mxu0 %v69
    %96 = vmatprep.subr.mxu0 0.0
    %97 = vmatpush1.msra.mxu0 %v70
    %98 = vmatprep.subr.mxu0 0.0
    %99 = vmatpush1.msra.mxu0 %v71
    %100 = vmatprep.subr.mxu0 0.0
    %101 = vmatpush1.msra.mxu0 %v72
    %102 = vmatprep.subr.mxu0 0.0
    %103 = vmatpush1.msra.mxu0 %v73
    %104 = vmatprep.subr.mxu0 0.0
    %105 = vmatpush1.msra.mxu0 %v74
    %106 = vmatprep.subr.mxu0 0.0
    %107 = vmatpush1.msra.mxu0 %v75
    %108 = vmatprep.subr.mxu0 0.0
    %109 = vmatpush1.msra.mxu0 %v76
    %110 = vmatprep.subr.mxu0 0.0
    %111 = vmatpush1.msra.mxu0 %v77
    %112 = vmatprep.subr.mxu0 0.0
    %113 = vmatpush1.msra.mxu0 %v78
    %114 = vmatprep.subr.mxu0 0.0
    %115 = vmatpush1.msra.mxu0 %v79
    %116 = vmatprep.subr.mxu0 0.0
    %117 = vmatpush1.msra.mxu0 0.0
    %118 = vmatprep.subr.mxu0 0.0
    %119 = vmatpush1.msra.mxu0 0.0
    %120 = vmatprep.subr.mxu0 0.0
    %121 = vmatpush1.msra.mxu0 0.0
    %122 = vmatprep.subr.mxu0 0.0
    %123 = vmatpush1.msra.mxu0 0.0
    %124 = vmatprep.subr.mxu0 0.0
    %125 = vmatpush1.msra.mxu0 0.0
    %126 = vmatprep.subr.mxu0 0.0
    %127 = vmatpush1.msra.mxu0 0.0
    %128 = vmatprep.subr.mxu0 0.0
    %129 = vmatpush1.msra.mxu0 0.0
    %130 = vmatprep.subr.mxu0 0.0
    %131 = vmatpush1.msra.mxu0 0.0
    %132 = vmatprep.subr.mxu0 0.0
    %133 = vmatpush1.msra.mxu0 0.0
    %134 = vmatprep.subr.mxu0 0.0
    %135 = vmatpush1.msra.mxu0 0.0
    %136 = vmatprep.subr.mxu0 0.0
    %137 = vmatpush1.msra.mxu0 0.0
    %138 = vmatprep.subr.mxu0 0.0
    %139 = vmatpush1.msra.mxu0 0.0
    %140 = vmatprep.subr.mxu0 0.0
    %141 = vmatpush1.msra.mxu0 0.0
    %142 = vmatprep.subr.mxu0 0.0
    %143 = vmatpush1.msra.mxu0 0.0
    %144 = vmatprep.subr.mxu0 0.0
    %145 = vmatpush1.msra.mxu0 0.0
    %146 = vmatprep.subr.mxu0 0.0
    %147 = vmatpush1.msra.mxu0 0.0
    %148 = vmatprep.mubr.f32.mxu0 0.0
    %149 = vmatmul.mubr.f32.gmra.mrb[0].mxu0 %v60
    %v150 = vpop.f32.mrb[0].mxu0
    %v151 = vadd.f32 %v80, %v150
    %v152 = vpop.f32.mrb[0].mxu0
    %153 = vmatprep.mubr.f32.mxu0 0.0
    %154 = vmatmul.mubr.f32.gmra.mrb[0].mxu0 %v61
    %v155 = vpop.f32.mrb[0].mxu0
    %v156 = vadd.f32 %v81, %v155
    %v157 = vpop.f32.mrb[0].mxu0
    %158 = vmatprep.mubr.f32.mxu0 0.0
    %159 = vmatmul.mubr.f32.gmra.mrb[0].mxu0 %v62
    %v160 = vpop.f32.mrb[0].mxu0
    %v161 = vadd.f32 %v82, %v160
    %v162 = vpop.f32.mrb[0].mxu0
    %163 = vmatprep.mubr.f32.mxu0 0.0
    %164 = vmatmul.mubr.f32.gmra.mrb[0].mxu0 %v63
    %v165 = vpop.f32.mrb[0].mxu0
    %v166 = vadd.f32 %v83, %v165
    %v167 = vpop.f32.mrb[0].mxu0
    %168 = vdwg.mxu0
    %v169 = vld [vmem:[%s4] sm:$0x1]
    %v170 = vld [vmem:[%s4 + $0x1] sm:$0x1]
    %vm171 = vcmask 261120
    %v172 = vsel %vm171, %v151, 0.0
    %173 = vadd.xlane.f32.xlu0 %v172
    %v174 = vpop.xlane.xlu0 %173
    %v175 = vsel %vm171, %v156, 0.0
    %176 = vadd.xlane.f32.xlu0 %v175
    %v177 = vpop.xlane.xlu0 %176
    %v178 = vsel %vm171, %v161, 0.0
    %179 = vadd.xlane.f32.xlu0 %v178
    %v180 = vpop.xlane.xlu0 %179
    %v181 = vsel %vm171, %v166, 0.0
    %182 = vadd.xlane.f32.xlu0 %v181
    %v183 = vpop.xlane.xlu0 %182
    %v184 = vrcp.pop 32.0
    %v185 = vmul.f32 %v174, %v184
    %v186 = vmul.f32 %v177, %v184
    %v187 = vmul.f32 %v180, %v184
    %v188 = vmul.f32 %v183, %v184
    %v189 = vsub.f32 %v151, %v185
    %v190 = vsub.f32 %v156, %v186
    %v191 = vsub.f32 %v161, %v187
    %v192 = vsub.f32 %v166, %v188
    %v193 = vmul.f32 %v189, %v189
    %v194 = vmul.f32 %v190, %v190
    %v195 = vmul.f32 %v191, %v191
    %v196 = vmul.f32 %v192, %v192
    %v197 = vsel %vm171, %v193, 0.0
    %198 = vadd.xlane.f32.xlu0 %v197
    %v199 = vpop.xlane.xlu0 %198
    %v200 = vsel %vm171, %v194, 0.0
    %201 = vadd.xlane.f32.xlu0 %v200
    %v202 = vpop.xlane.xlu0 %201
    %v203 = vsel %vm171, %v195, 0.0
    %204 = vadd.xlane.f32.xlu0 %v203
    %v205 = vpop.xlane.xlu0 %204
    %v206 = vsel %vm171, %v196, 0.0
    %207 = vadd.xlane.f32.xlu0 %v206
    %v208 = vpop.xlane.xlu0 %207
    %v209 = vmul.f32 %v199, %v184
    %v210 = vmul.f32 %v202, %v184
    %v211 = vmul.f32 %v205, %v184
    %v212 = vmul.f32 %v208, %v184
    %v213 = vadd.f32 %v209, 1e-12
    %v214 = vadd.f32 %v210, 1e-12
    %v215 = vadd.f32 %v211, 1e-12
    %v216 = vadd.f32 %v212, 1e-12
    %v217 = vrsqrt.pop %v213
    %v218 = vrsqrt.pop %v214
    %v219 = vrsqrt.pop %v215
    %v220 = vrsqrt.pop %v216
    %v221 = vmul.f32 %v189, %v217
    %v222 = vmul.f32 %v190, %v218
    %v223 = vmul.f32 %v191, %v219
    %v224 = vmul.f32 %v192, %v220
    %v225 = vlaneseq
    %v226 = vshrl.u32 %v225, 7
    %v227 = vsub.s32 0, %v226
    %v228 = vrot.slane %v169, %v227
    %v229 = vmul.f32 %v221, %v228
    %v230 = vmul.f32 %v222, %v228
    %v231 = vmul.f32 %v223, %v228
    %v232 = vmul.f32 %v224, %v228
    %v233 = vlaneseq
    %v234 = vshrl.u32 %v233, 7
    %v235 = vsub.s32 0, %v234
    %v236 = vrot.slane %v170, %v235
    %v237 = vadd.f32 %v229, %v236
    %v238 = vadd.f32 %v230, %v236
    %v239 = vadd.f32 %v231, %v236
    %v240 = vadd.f32 %v232, %v236
    %v241 = vld [vmem:[#allocation2 + $0xa0] sm:$0xff]
    %v242 = vld [vmem:[#allocation2 + $0xa8] sm:$0xff]
    %v243 = vld [vmem:[#allocation2 + $0xb0] sm:$0xff]
    %v244 = vld [vmem:[#allocation2 + $0xb8] sm:$0xff]
    %v245 = vld [vmem:[%s4 + $0x2] sm:$0x1]
    %v246 = vlaneseq
    %v247 = vshrl.u32 %v246, 7
    %v248 = vsub.s32 0, %v247
    %v249 = vrot.slane %v245, %v248
    %v251 = vsel %vm171, %v237, 0
    %v254 = vsel %vm171, %v238, 0
    %v257 = vsel %vm171, %v239, 0
    %v260 = vsel %vm171, %v240, 0
    %262 = vmatprep.subr.mxu0 0.0
    %263 = vmatpush1.msra.mxu0 %v241
    %264 = vmatprep.subr.mxu0 0.0
    %265 = vmatpush1.msra.mxu0 %v242
    %266 = vmatprep.subr.mxu0 0.0
    %267 = vmatpush1.msra.mxu0 %v243
    %268 = vmatprep.subr.mxu0 0.0
    %269 = vmatpush1.msra.mxu0 %v244
    %270 = vmatprep.subr.mxu0 0.0
    %271 = vmatpush1.msra.mxu0 0.0
    %272 = vmatprep.subr.mxu0 0.0
    %273 = vmatpush1.msra.mxu0 0.0
    %274 = vmatprep.subr.mxu0 0.0
    %275 = vmatpush1.msra.mxu0 0.0
    %276 = vmatprep.subr.mxu0 0.0
    %277 = vmatpush1.msra.mxu0 0.0
    %278 = vmatprep.subr.mxu0 0.0
    %279 = vmatpush1.msra.mxu0 0.0
    %280 = vmatprep.subr.mxu0 0.0
    %281 = vmatpush1.msra.mxu0 0.0
    %282 = vmatprep.subr.mxu0 0.0
    %283 = vmatpush1.msra.mxu0 0.0
    %284 = vmatprep.subr.mxu0 0.0
    %285 = vmatpush1.msra.mxu0 0.0
    %286 = vmatprep.subr.mxu0 0.0
    %287 = vmatpush1.msra.mxu0 0.0
    %288 = vmatprep.subr.mxu0 0.0
    %289 = vmatpush1.msra.mxu0 0.0
    %290 = vmatprep.subr.mxu0 0.0
    %291 = vmatpush1.msra.mxu0 0.0
    %292 = vmatprep.subr.mxu0 0.0
    %293 = vmatpush1.msra.mxu0 0.0
    %294 = vmatprep.subr.mxu0 0.0
    %295 = vmatpush1.msra.mxu0 0.0
    %296 = vmatprep.subr.mxu0 0.0
    %297 = vmatpush1.msra.mxu0 0.0
    %298 = vmatprep.subr.mxu0 0.0
    %299 = vmatpush1.msra.mxu0 0.0
    %300 = vmatprep.subr.mxu0 0.0
    %301 = vmatpush1.msra.mxu0 0.0
    %302 = vmatprep.subr.mxu0 0.0
    %303 = vmatpush1.msra.mxu0 0.0
    %304 = vmatprep.subr.mxu0 0.0
    %305 = vmatpush1.msra.mxu0 0.0
    %306 = vmatprep.subr.mxu0 0.0
    %307 = vmatpush1.msra.mxu0 0.0
    %308 = vmatprep.subr.mxu0 0.0
    %309 = vmatpush1.msra.mxu0 0.0
    %310 = vmatprep.subr.mxu0 0.0
    %311 = vmatpush1.msra.mxu0 0.0
    %312 = vmatprep.subr.mxu0 0.0
    %313 = vmatpush1.msra.mxu0 0.0
    %314 = vmatprep.subr.mxu0 0.0
    %315 = vmatpush1.msra.mxu0 0.0
    %316 = vmatprep.subr.mxu0 0.0
    %317 = vmatpush1.msra.mxu0 0.0
    %318 = vmatprep.subr.mxu0 0.0
    %319 = vmatpush1.msra.mxu0 0.0
    %320 = vmatprep.subr.mxu0 0.0
    %321 = vmatpush1.msra.mxu0 0.0
    %322 = vmatprep.subr.mxu0 0.0
    %323 = vmatpush1.msra.mxu0 0.0
    %324 = vmatprep.subr.mxu0 0.0
    %325 = vmatpush1.msra.mxu0 0.0
    %326 = vmatprep.mubr.f32.mxu0 0.0
    %327 = vmatmul.mubr.f32.gmra.mrb[0].mxu0 %v251
    %v328 = vpop.f32.mrb[0].mxu0
    %v329 = vadd.f32 %v249, %v328
    %v330 = vpop.f32.mrb[0].mxu0
    %331 = vmatprep.mubr.f32.mxu0 0.0
    %332 = vmatmul.mubr.f32.gmra.mrb[0].mxu0 %v254
    %v333 = vpop.f32.mrb[0].mxu0
    %v334 = vadd.f32 %v249, %v333
    %v335 = vpop.f32.mrb[0].mxu0
    %336 = vmatprep.mubr.f32.mxu0 0.0
    %337 = vmatmul.mubr.f32.gmra.mrb[0].mxu0 %v257
    %v338 = vpop.f32.mrb[0].mxu0
    %v339 = vadd.f32 %v249, %v338
    %v340 = vpop.f32.mrb[0].mxu0
    %341 = vmatprep.mubr.f32.mxu0 0.0
    %342 = vmatmul.mubr.f32.gmra.mrb[0].mxu0 %v260
    %v343 = vpop.f32.mrb[0].mxu0
    %v344 = vadd.f32 %v249, %v343
    %v345 = vpop.f32.mrb[0].mxu0
    %346 = vdwg.mxu0
    %351 = vrot.lane.b32.xlu0 %v329, 112
    %v352 = vpop.permute.xlu0 %351
    %353 = vrot.lane.b32.xlu0 %v334, 112
    %v354 = vpop.permute.xlu0 %353
    %355 = vrot.lane.b32.xlu0 %v339, 112
    %v356 = vpop.permute.xlu0 %355
    %357 = vrot.lane.b32.xlu0 %v344, 112
    %v358 = vpop.permute.xlu0 %357
    %v359 = vld [vmem:[%s1] sm:$0xf]
    %v360 = vsub.f32 1.0, %v359
    %v361 = vmul.f32 %v360, -1e+09
    %v364 = vunpack.c.l.s4 1966171168
    %v365 = vunpack.c.0.s8 %v364
    %v366 = vlaneseq
    %v367 = vshrl.u32 %v366, 7
    %v368 = vsub.s32 %v365, %v367
    %v369 = vrot.slane %v361, %v368
    %v370 = vcombine.high %v369, %v369
    %v372 = vunpack.c.l.s4 1966171168
    %v373 = vunpack.c.0.s8 %v372
    %v374 = vlaneseq
    %v375 = vshrl.u32 %v374, 7
    %v376 = vsub.s32 %v373, %v375
    %v377 = vrot.slane %v369, %v376
    %v379 = vunpack.c.l.s4 1966171168
    %v380 = vunpack.c.0.s8 %v379
    %v381 = vlaneseq
    %v382 = vshrl.u32 %v381, 7
    %v383 = vsub.s32 %v380, %v382
    %v384 = vrot.slane %v370, %v383
    %v385 = vcombine.high %v377, %v377
    %v386 = vcombine.high %v384, %v384
    %387 = vrot.lane.b32.xlu0 %v329, 96
    %v388 = vpop.permute.xlu0 %387
    %vm389 = vcmask 130048
    %v390 = vsel %vm389, %v329, 0
    %v392 = vsel %vm389, %v388, 0
    %394 = vmatprep.subr.mxu0 0.0
    %395 = vmatpush1.xpose.msra.mxu0 %v392
    %396 = vmatprep.subr.mxu0 0.0
    %397 = vmatpush1.xpose.msra.mxu0 0.0
    %398 = vmatprep.subr.mxu0 0.0
    %399 = vmatpush1.xpose.msra.mxu0 0.0
    %400 = vmatprep.subr.mxu0 0.0
    %401 = vmatpush1.xpose.msra.mxu0 0.0
    %402 = vmatprep.subr.mxu0 0.0
    %403 = vmatpush1.xpose.msra.mxu0 0.0
    %404 = vmatprep.subr.mxu0 0.0
    %405 = vmatpush1.xpose.msra.mxu0 0.0
    %406 = vmatprep.subr.mxu0 0.0
    %407 = vmatpush1.xpose.msra.mxu0 0.0
    %408 = vmatprep.subr.mxu0 0.0
    %409 = vmatpush1.xpose.msra.mxu0 0.0
    %410 = vmatprep.subr.mxu0 0.0
    %411 = vmatpush1.xpose.msra.mxu0 0.0
    %412 = vmatprep.subr.mxu0 0.0
    %413 = vmatpush1.xpose.msra.mxu0 0.0
    %414 = vmatprep.subr.mxu0 0.0
    %415 = vmatpush1.xpose.msra.mxu0 0.0
    %416 = vmatprep.subr.mxu0 0.0
    %417 = vmatpush1.xpose.msra.mxu0 0.0
    %418 = vmatprep.subr.mxu0 0.0
    %419 = vmatpush1.xpose.msra.mxu0 0.0
    %420 = vmatprep.subr.mxu0 0.0
    %421 = vmatpush1.xpose.msra.mxu0 0.0
    %422 = vmatprep.subr.mxu0 0.0
    %423 = vmatpush1.xpose.msra.mxu0 0.0
    %424 = vmatprep.subr.mxu0 0.0
    %425 = vmatpush1.xpose.msra.mxu0 0.0
    %426 = vmatprep.subr.mxu0 0.0
    %427 = vmatpush1.xpose.msra.mxu0 0.0
    %428 = vmatprep.subr.mxu0 0.0
    %429 = vmatpush1.xpose.msra.mxu0 0.0
    %430 = vmatprep.subr.mxu0 0.0
    %431 = vmatpush1.xpose.msra.mxu0 0.0
    %432 = vmatprep.subr.mxu0 0.0
    %433 = vmatpush1.xpose.msra.mxu0 0.0
    %434 = vmatprep.subr.mxu0 0.0
    %435 = vmatpush1.xpose.msra.mxu0 0.0
    %436 = vmatprep.subr.mxu0 0.0
    %437 = vmatpush1.xpose.msra.mxu0 0.0
    %438 = vmatprep.subr.mxu0 0.0
    %439 = vmatpush1.xpose.msra.mxu0 0.0
    %440 = vmatprep.subr.mxu0 0.0
    %441 = vmatpush1.xpose.msra.mxu0 0.0
    %442 = vmatprep.subr.mxu0 0.0
    %443 = vmatpush1.xpose.msra.mxu0 0.0
    %444 = vmatprep.subr.mxu0 0.0
    %445 = vmatpush1.xpose.msra.mxu0 0.0
    %446 = vmatprep.subr.mxu0 0.0
    %447 = vmatpush1.xpose.msra.mxu0 0.0
    %448 = vmatprep.subr.mxu0 0.0
    %449 = vmatpush1.xpose.msra.mxu0 0.0
    %450 = vmatprep.subr.mxu0 0.0
    %451 = vmatpush1.xpose.msra.mxu0 0.0
    %452 = vmatprep.subr.mxu0 0.0
    %453 = vmatpush1.xpose.msra.mxu0 0.0
    %454 = vmatprep.subr.mxu0 0.0
    %455 = vmatpush1.xpose.msra.mxu0 0.0
    %456 = vmatprep.subr.mxu0 0.0
    %457 = vmatpush1.xpose.msra.mxu0 0.0
    %458 = vmatprep.mubr.f32.mxu0 0.0
    %459 = vmatmul.mubr.f32.gmra.mrb[0].mxu0 %v390
    %v460 = vpop.f32.mrb[0].mxu0
    %v461 = vadd.f32 0.0, %v460
    %v462 = vpop.f32.mrb[0].mxu0
    %463 = vdwg.mxu0
    %464 = vrot.lane.b32.xlu0 %v334, 96
    %v465 = vpop.permute.xlu0 %464
    %v466 = vsel %vm389, %v334, 0
    %v468 = vsel %vm389, %v465, 0
    %470 = vmatprep.subr.mxu0 0.0
    %471 = vmatpush1.xpose.msra.mxu0 %v468
    %472 = vmatprep.subr.mxu0 0.0
    %473 = vmatpush1.xpose.msra.mxu0 0.0
    %474 = vmatprep.subr.mxu0 0.0
    %475 = vmatpush1.xpose.msra.mxu0 0.0
    %476 = vmatprep.subr.mxu0 0.0
    %477 = vmatpush1.xpose.msra.mxu0 0.0
    %478 = vmatprep.subr.mxu0 0.0
    %479 = vmatpush1.xpose.msra.mxu0 0.0
    %480 = vmatprep.subr.mxu0 0.0
    %481 = vmatpush1.xpose.msra.mxu0 0.0
    %482 = vmatprep.subr.mxu0 0.0
    %483 = vmatpush1.xpose.msra.mxu0 0.0
    %484 = vmatprep.subr.mxu0 0.0
    %485 = vmatpush1.xpose.msra.mxu0 0.0
    %486 = vmatprep.subr.mxu0 0.0
    %487 = vmatpush1.xpose.msra.mxu0 0.0
    %488 = vmatprep.subr.mxu0 0.0
    %489 = vmatpush1.xpose.msra.mxu0 0.0
    %490 = vmatprep.subr.mxu0 0.0
    %491 = vmatpush1.xpose.msra.mxu0 0.0
    %492 = vmatprep.subr.mxu0 0.0
    %493 = vmatpush1.xpose.msra.mxu0 0.0
    %494 = vmatprep.subr.mxu0 0.0
    %495 = vmatpush1.xpose.msra.mxu0 0.0
    %496 = vmatprep.subr.mxu0 0.0
    %497 = vmatpush1.xpose.msra.mxu0 0.0
    %498 = vmatprep.subr.mxu0 0.0
    %499 = vmatpush1.xpose.msra.mxu0 0.0
    %500 = vmatprep.subr.mxu0 0.0
    %501 = vmatpush1.xpose.msra.mxu0 0.0
    %502 = vmatprep.subr.mxu0 0.0
    %503 = vmatpush1.xpose.msra.mxu0 0.0
    %504 = vmatprep.subr.mxu0 0.0
    %505 = vmatpush1.xpose.msra.mxu0 0.0
    %506 = vmatprep.subr.mxu0 0.0
    %507 = vmatpush1.xpose.msra.mxu0 0.0
    %508 = vmatprep.subr.mxu0 0.0
    %509 = vmatpush1.xpose.msra.mxu0 0.0
    %510 = vmatprep.subr.mxu0 0.0
    %511 = vmatpush1.xpose.msra.mxu0 0.0
    %512 = vmatprep.subr.mxu0 0.0
    %513 = vmatpush1.xpose.msra.mxu0 0.0
    %514 = vmatprep.subr.mxu0 0.0
    %515 = vmatpush1.xpose.msra.mxu0 0.0
    %516 = vmatprep.subr.mxu0 0.0
    %517 = vmatpush1.xpose.msra.mxu0 0.0
    %518 = vmatprep.subr.mxu0 0.0
    %519 = vmatpush1.xpose.msra.mxu0 0.0
    %520 = vmatprep.subr.mxu0 0.0
    %521 = vmatpush1.xpose.msra.mxu0 0.0
    %522 = vmatprep.subr.mxu0 0.0
    %523 = vmatpush1.xpose.msra.mxu0 0.0
    %524 = vmatprep.subr.mxu0 0.0
    %525 = vmatpush1.xpose.msra.mxu0 0.0
    %526 = vmatprep.subr.mxu0 0.0
    %527 = vmatpush1.xpose.msra.mxu0 0.0
    %528 = vmatprep.subr.mxu0 0.0
    %529 = vmatpush1.xpose.msra.mxu0 0.0
    %530 = vmatprep.subr.mxu0 0.0
    %531 = vmatpush1.xpose.msra.mxu0 0.0
    %532 = vmatprep.subr.mxu0 0.0
    %533 = vmatpush1.xpose.msra.mxu0 0.0
    %534 = vmatprep.mubr.f32.mxu0 0.0
    %535 = vmatmul.mubr.f32.gmra.mrb[0].mxu0 %v466
    %v536 = vpop.f32.mrb[0].mxu0
    %v537 = vadd.f32 0.0, %v536
    %v538 = vpop.f32.mrb[0].mxu0
    %539 = vdwg.mxu0
    %540 = vrot.lane.b32.xlu0 %v339, 96
    %v541 = vpop.permute.xlu0 %540
    %v542 = vsel %vm389, %v339, 0
    %v544 = vsel %vm389, %v541, 0
    %546 = vmatprep.subr.mxu0 0.0
    %547 = vmatpush1.xpose.msra.mxu0 %v544
    %548 = vmatprep.subr.mxu0 0.0
    %549 = vmatpush1.xpose.msra.mxu0 0.0
    %550 = vmatprep.subr.mxu0 0.0
    %551 = vmatpush1.xpose.msra.mxu0 0.0
    %552 = vmatprep.subr.mxu0 0.0
    %553 = vmatpush1.xpose.msra.mxu0 0.0
    %554 = vmatprep.subr.mxu0 0.0
    %555 = vmatpush1.xpose.msra.mxu0 0.0
    %556 = vmatprep.subr.mxu0 0.0
    %557 = vmatpush1.xpose.msra.mxu0 0.0
    %558 = vmatprep.subr.mxu0 0.0
    %559 = vmatpush1.xpose.msra.mxu0 0.0
    %560 = vmatprep.subr.mxu0 0.0
    %561 = vmatpush1.xpose.msra.mxu0 0.0
    %562 = vmatprep.subr.mxu0 0.0
    %563 = vmatpush1.xpose.msra.mxu0 0.0
    %564 = vmatprep.subr.mxu0 0.0
    %565 = vmatpush1.xpose.msra.mxu0 0.0
    %566 = vmatprep.subr.mxu0 0.0
    %567 = vmatpush1.xpose.msra.mxu0 0.0
    %568 = vmatprep.subr.mxu0 0.0
    %569 = vmatpush1.xpose.msra.mxu0 0.0
    %570 = vmatprep.subr.mxu0 0.0
    %571 = vmatpush1.xpose.msra.mxu0 0.0
    %572 = vmatprep.subr.mxu0 0.0
    %573 = vmatpush1.xpose.msra.mxu0 0.0
    %574 = vmatprep.subr.mxu0 0.0
    %575 = vmatpush1.xpose.msra.mxu0 0.0
    %576 = vmatprep.subr.mxu0 0.0
    %577 = vmatpush1.xpose.msra.mxu0 0.0
    %578 = vmatprep.subr.mxu0 0.0
    %579 = vmatpush1.xpose.msra.mxu0 0.0
    %580 = vmatprep.subr.mxu0 0.0
    %581 = vmatpush1.xpose.msra.mxu0 0.0
    %582 = vmatprep.subr.mxu0 0.0
    %583 = vmatpush1.xpose.msra.mxu0 0.0
    %584 = vmatprep.subr.mxu0 0.0
    %585 = vmatpush1.xpose.msra.mxu0 0.0
    %586 = vmatprep.subr.mxu0 0.0
    %587 = vmatpush1.xpose.msra.mxu0 0.0
    %588 = vmatprep.subr.mxu0 0.0
    %589 = vmatpush1.xpose.msra.mxu0 0.0
    %590 = vmatprep.subr.mxu0 0.0
    %591 = vmatpush1.xpose.msra.mxu0 0.0
    %592 = vmatprep.subr.mxu0 0.0
    %593 = vmatpush1.xpose.msra.mxu0 0.0
    %594 = vmatprep.subr.mxu0 0.0
    %595 = vmatpush1.xpose.msra.mxu0 0.0
    %596 = vmatprep.subr.mxu0 0.0
    %597 = vmatpush1.xpose.msra.mxu0 0.0
    %598 = vmatprep.subr.mxu0 0.0
    %599 = vmatpush1.xpose.msra.mxu0 0.0
    %600 = vmatprep.subr.mxu0 0.0
    %601 = vmatpush1.xpose.msra.mxu0 0.0
    %602 = vmatprep.subr.mxu0 0.0
    %603 = vmatpush1.xpose.msra.mxu0 0.0
    %604 = vmatprep.subr.mxu0 0.0
    %605 = vmatpush1.xpose.msra.mxu0 0.0
    %606 = vmatprep.subr.mxu0 0.0
    %607 = vmatpush1.xpose.msra.mxu0 0.0
    %608 = vmatprep.subr.mxu0 0.0
    %609 = vmatpush1.xpose.msra.mxu0 0.0
    %610 = vmatprep.mubr.f32.mxu0 0.0
    %611 = vmatmul.mubr.f32.gmra.mrb[0].mxu0 %v542
    %v612 = vpop.f32.mrb[0].mxu0
    %v613 = vadd.f32 0.0, %v612
    %v614 = vpop.f32.mrb[0].mxu0
    %615 = vdwg.mxu0
    %616 = vrot.lane.b32.xlu0 %v344, 96
    %v617 = vpop.permute.xlu0 %616
    %v618 = vsel %vm389, %v344, 0
    %v620 = vsel %vm389, %v617, 0
    %622 = vmatprep.subr.mxu0 0.0
    %623 = vmatpush1.xpose.msra.mxu0 %v620
    %624 = vmatprep.subr.mxu0 0.0
    %625 = vmatpush1.xpose.msra.mxu0 0.0
    %626 = vmatprep.subr.mxu0 0.0
    %627 = vmatpush1.xpose.msra.mxu0 0.0
    %628 = vmatprep.subr.mxu0 0.0
    %629 = vmatpush1.xpose.msra.mxu0 0.0
    %630 = vmatprep.subr.mxu0 0.0
    %631 = vmatpush1.xpose.msra.mxu0 0.0
    %632 = vmatprep.subr.mxu0 0.0
    %633 = vmatpush1.xpose.msra.mxu0 0.0
    %634 = vmatprep.subr.mxu0 0.0
    %635 = vmatpush1.xpose.msra.mxu0 0.0
    %636 = vmatprep.subr.mxu0 0.0
    %637 = vmatpush1.xpose.msra.mxu0 0.0
    %638 = vmatprep.subr.mxu0 0.0
    %639 = vmatpush1.xpose.msra.mxu0 0.0
    %640 = vmatprep.subr.mxu0 0.0
    %641 = vmatpush1.xpose.msra.mxu0 0.0
    %642 = vmatprep.subr.mxu0 0.0
    %643 = vmatpush1.xpose.msra.mxu0 0.0
    %644 = vmatprep.subr.mxu0 0.0
    %645 = vmatpush1.xpose.msra.mxu0 0.0
    %646 = vmatprep.subr.mxu0 0.0
    %647 = vmatpush1.xpose.msra.mxu0 0.0
    %648 = vmatprep.subr.mxu0 0.0
    %649 = vmatpush1.xpose.msra.mxu0 0.0
    %650 = vmatprep.subr.mxu0 0.0
    %651 = vmatpush1.xpose.msra.mxu0 0.0
    %652 = vmatprep.subr.mxu0 0.0
    %653 = vmatpush1.xpose.msra.mxu0 0.0
    %654 = vmatprep.subr.mxu0 0.0
    %655 = vmatpush1.xpose.msra.mxu0 0.0
    %656 = vmatprep.subr.mxu0 0.0
    %657 = vmatpush1.xpose.msra.mxu0 0.0
    %658 = vmatprep.subr.mxu0 0.0
    %659 = vmatpush1.xpose.msra.mxu0 0.0
    %660 = vmatprep.subr.mxu0 0.0
    %661 = vmatpush1.xpose.msra.mxu0 0.0
    %662 = vmatprep.subr.mxu0 0.0
    %663 = vmatpush1.xpose.msra.mxu0 0.0
    %664 = vmatprep.subr.mxu0 0.0
    %665 = vmatpush1.xpose.msra.mxu0 0.0
    %666 = vmatprep.subr.mxu0 0.0
    %667 = vmatpush1.xpose.msra.mxu0 0.0
    %668 = vmatprep.subr.mxu0 0.0
    %669 = vmatpush1.xpose.msra.mxu0 0.0
    %670 = vmatprep.subr.mxu0 0.0
    %671 = vmatpush1.xpose.msra.mxu0 0.0
    %672 = vmatprep.subr.mxu0 0.0
    %673 = vmatpush1.xpose.msra.mxu0 0.0
    %674 = vmatprep.subr.mxu0 0.0
    %675 = vmatpush1.xpose.msra.mxu0 0.0
    %676 = vmatprep.subr.mxu0 0.0
    %677 = vmatpush1.xpose.msra.mxu0 0.0
    %678 = vmatprep.subr.mxu0 0.0
    %679 = vmatpush1.xpose.msra.mxu0 0.0
    %680 = vmatprep.subr.mxu0 0.0
    %681 = vmatpush1.xpose.msra.mxu0 0.0
    %682 = vmatprep.subr.mxu0 0.0
    %683 = vmatpush1.xpose.msra.mxu0 0.0
    %684 = vmatprep.subr.mxu0 0.0
    %685 = vmatpush1.xpose.msra.mxu0 0.0
    %686 = vmatprep.mubr.f32.mxu0 0.0
    %687 = vmatmul.mubr.f32.gmra.mrb[0].mxu0 %v618
    %v688 = vpop.f32.mrb[0].mxu0
    %v689 = vadd.f32 0.0, %v688
    %v690 = vpop.f32.mrb[0].mxu0
    %691 = vdwg.mxu0
    %692 = vrot.lane.b32.xlu0 %v352, 96
    %v693 = vpop.permute.xlu0 %692
    %v694 = vsel %vm389, %v352, 0
    %v696 = vsel %vm389, %v693, 0
    %698 = vmatprep.subr.mxu0 0.0
    %699 = vmatpush1.xpose.msra.mxu0 %v696
    %700 = vmatprep.subr.mxu0 0.0
    %701 = vmatpush1.xpose.msra.mxu0 0.0
    %702 = vmatprep.subr.mxu0 0.0
    %703 = vmatpush1.xpose.msra.mxu0 0.0
    %704 = vmatprep.subr.mxu0 0.0
    %705 = vmatpush1.xpose.msra.mxu0 0.0
    %706 = vmatprep.subr.mxu0 0.0
    %707 = vmatpush1.xpose.msra.mxu0 0.0
    %708 = vmatprep.subr.mxu0 0.0
    %709 = vmatpush1.xpose.msra.mxu0 0.0
    %710 = vmatprep.subr.mxu0 0.0
    %711 = vmatpush1.xpose.msra.mxu0 0.0
    %712 = vmatprep.subr.mxu0 0.0
    %713 = vmatpush1.xpose.msra.mxu0 0.0
    %714 = vmatprep.subr.mxu0 0.0
    %715 = vmatpush1.xpose.msra.mxu0 0.0
    %716 = vmatprep.subr.mxu0 0.0
    %717 = vmatpush1.xpose.msra.mxu0 0.0
    %718 = vmatprep.subr.mxu0 0.0
    %719 = vmatpush1.xpose.msra.mxu0 0.0
    %720 = vmatprep.subr.mxu0 0.0
    %721 = vmatpush1.xpose.msra.mxu0 0.0
    %722 = vmatprep.subr.mxu0 0.0
    %723 = vmatpush1.xpose.msra.mxu0 0.0
    %724 = vmatprep.subr.mxu0 0.0
    %725 = vmatpush1.xpose.msra.mxu0 0.0
    %726 = vmatprep.subr.mxu0 0.0
    %727 = vmatpush1.xpose.msra.mxu0 0.0
    %728 = vmatprep.subr.mxu0 0.0
    %729 = vmatpush1.xpose.msra.mxu0 0.0
    %730 = vmatprep.subr.mxu0 0.0
    %731 = vmatpush1.xpose.msra.mxu0 0.0
    %732 = vmatprep.subr.mxu0 0.0
    %733 = vmatpush1.xpose.msra.mxu0 0.0
    %734 = vmatprep.subr.mxu0 0.0
    %735 = vmatpush1.xpose.msra.mxu0 0.0
    %736 = vmatprep.subr.mxu0 0.0
    %737 = vmatpush1.xpose.msra.mxu0 0.0
    %738 = vmatprep.subr.mxu0 0.0
    %739 = vmatpush1.xpose.msra.mxu0 0.0
    %740 = vmatprep.subr.mxu0 0.0
    %741 = vmatpush1.xpose.msra.mxu0 0.0
    %742 = vmatprep.subr.mxu0 0.0
    %743 = vmatpush1.xpose.msra.mxu0 0.0
    %744 = vmatprep.subr.mxu0 0.0
    %745 = vmatpush1.xpose.msra.mxu0 0.0
    %746 = vmatprep.subr.mxu0 0.0
    %747 = vmatpush1.xpose.msra.mxu0 0.0
    %748 = vmatprep.subr.mxu0 0.0
    %749 = vmatpush1.xpose.msra.mxu0 0.0
    %750 = vmatprep.subr.mxu0 0.0
    %751 = vmatpush1.xpose.msra.mxu0 0.0
    %752 = vmatprep.subr.mxu0 0.0
    %753 = vmatpush1.xpose.msra.mxu0 0.0
    %754 = vmatprep.subr.mxu0 0.0
    %755 = vmatpush1.xpose.msra.mxu0 0.0
    %756 = vmatprep.subr.mxu0 0.0
    %757 = vmatpush1.xpose.msra.mxu0 0.0
    %758 = vmatprep.subr.mxu0 0.0
    %759 = vmatpush1.xpose.msra.mxu0 0.0
    %760 = vmatprep.subr.mxu0 0.0
    %761 = vmatpush1.xpose.msra.mxu0 0.0
    %762 = vmatprep.mubr.f32.mxu0 0.0
    %763 = vmatmul.mubr.f32.gmra.mrb[0].mxu0 %v694
    %v764 = vpop.f32.mrb[0].mxu0
    %v765 = vadd.f32 0.0, %v764
    %v766 = vpop.f32.mrb[0].mxu0
    %767 = vdwg.mxu0
    %768 = vrot.lane.b32.xlu0 %v354, 96
    %v769 = vpop.permute.xlu0 %768
    %v770 = vsel %vm389, %v354, 0
    %v772 = vsel %vm389, %v769, 0
    %774 = vmatprep.subr.mxu0 0.0
    %775 = vmatpush1.xpose.msra.mxu0 %v772
    %776 = vmatprep.subr.mxu0 0.0
    %777 = vmatpush1.xpose.msra.mxu0 0.0
    %778 = vmatprep.subr.mxu0 0.0
    %779 = vmatpush1.xpose.msra.mxu0 0.0
    %780 = vmatprep.subr.mxu0 0.0
    %781 = vmatpush1.xpose.msra.mxu0 0.0
    %782 = vmatprep.subr.mxu0 0.0
    %783 = vmatpush1.xpose.msra.mxu0 0.0
    %784 = vmatprep.subr.mxu0 0.0
    %785 = vmatpush1.xpose.msra.mxu0 0.0
    %786 = vmatprep.subr.mxu0 0.0
    %787 = vmatpush1.xpose.msra.mxu0 0.0
    %788 = vmatprep.subr.mxu0 0.0
    %789 = vmatpush1.xpose.msra.mxu0 0.0
    %790 = vmatprep.subr.mxu0 0.0
    %791 = vmatpush1.xpose.msra.mxu0 0.0
    %792 = vmatprep.subr.mxu0 0.0
    %793 = vmatpush1.xpose.msra.mxu0 0.0
    %794 = vmatprep.subr.mxu0 0.0
    %795 = vmatpush1.xpose.msra.mxu0 0.0
    %796 = vmatprep.subr.mxu0 0.0
    %797 = vmatpush1.xpose.msra.mxu0 0.0
    %798 = vmatprep.subr.mxu0 0.0
    %799 = vmatpush1.xpose.msra.mxu0 0.0
    %800 = vmatprep.subr.mxu0 0.0
    %801 = vmatpush1.xpose.msra.mxu0 0.0
    %802 = vmatprep.subr.mxu0 0.0
    %803 = vmatpush1.xpose.msra.mxu0 0.0
    %804 = vmatprep.subr.mxu0 0.0
    %805 = vmatpush1.xpose.msra.mxu0 0.0
    %806 = vmatprep.subr.mxu0 0.0
    %807 = vmatpush1.xpose.msra.mxu0 0.0
    %808 = vmatprep.subr.mxu0 0.0
    %809 = vmatpush1.xpose.msra.mxu0 0.0
    %810 = vmatprep.subr.mxu0 0.0
    %811 = vmatpush1.xpose.msra.mxu0 0.0
    %812 = vmatprep.subr.mxu0 0.0
    %813 = vmatpush1.xpose.msra.mxu0 0.0
    %814 = vmatprep.subr.mxu0 0.0
    %815 = vmatpush1.xpose.msra.mxu0 0.0
    %816 = vmatprep.subr.mxu0 0.0
    %817 = vmatpush1.xpose.msra.mxu0 0.0
    %818 = vmatprep.subr.mxu0 0.0
    %819 = vmatpush1.xpose.msra.mxu0 0.0
    %820 = vmatprep.subr.mxu0 0.0
    %821 = vmatpush1.xpose.msra.mxu0 0.0
    %822 = vmatprep.subr.mxu0 0.0
    %823 = vmatpush1.xpose.msra.mxu0 0.0
    %824 = vmatprep.subr.mxu0 0.0
    %825 = vmatpush1.xpose.msra.mxu0 0.0
    %826 = vmatprep.subr.mxu0 0.0
    %827 = vmatpush1.xpose.msra.mxu0 0.0
    %828 = vmatprep.subr.mxu0 0.0
    %829 = vmatpush1.xpose.msra.mxu0 0.0
    %830 = vmatprep.subr.mxu0 0.0
    %831 = vmatpush1.xpose.msra.mxu0 0.0
    %832 = vmatprep.subr.mxu0 0.0
    %833 = vmatpush1.xpose.msra.mxu0 0.0
    %834 = vmatprep.subr.mxu0 0.0
    %835 = vmatpush1.xpose.msra.mxu0 0.0
    %836 = vmatprep.subr.mxu0 0.0
    %837 = vmatpush1.xpose.msra.mxu0 0.0
    %838 = vmatprep.mubr.f32.mxu0 0.0
    %839 = vmatmul.mubr.f32.gmra.mrb[0].mxu0 %v770
    %v840 = vpop.f32.mrb[0].mxu0
    %v841 = vadd.f32 0.0, %v840
    %v842 = vpop.f32.mrb[0].mxu0
    %843 = vdwg.mxu0
    %844 = vrot.lane.b32.xlu0 %v356, 96
    %v845 = vpop.permute.xlu0 %844
    %v846 = vsel %vm389, %v356, 0
    %v848 = vsel %vm389, %v845, 0
    %850 = vmatprep.subr.mxu0 0.0
    %851 = vmatpush1.xpose.msra.mxu0 %v848
    %852 = vmatprep.subr.mxu0 0.0
    %853 = vmatpush1.xpose.msra.mxu0 0.0
    %854 = vmatprep.subr.mxu0 0.0
    %855 = vmatpush1.xpose.msra.mxu0 0.0
    %856 = vmatprep.subr.mxu0 0.0
    %857 = vmatpush1.xpose.msra.mxu0 0.0
    %858 = vmatprep.subr.mxu0 0.0
    %859 = vmatpush1.xpose.msra.mxu0 0.0
    %860 = vmatprep.subr.mxu0 0.0
    %861 = vmatpush1.xpose.msra.mxu0 0.0
    %862 = vmatprep.subr.mxu0 0.0
    %863 = vmatpush1.xpose.msra.mxu0 0.0
    %864 = vmatprep.subr.mxu0 0.0
    %865 = vmatpush1.xpose.msra.mxu0 0.0
    %866 = vmatprep.subr.mxu0 0.0
    %867 = vmatpush1.xpose.msra.mxu0 0.0
    %868 = vmatprep.subr.mxu0 0.0
    %869 = vmatpush1.xpose.msra.mxu0 0.0
    %870 = vmatprep.subr.mxu0 0.0
    %871 = vmatpush1.xpose.msra.mxu0 0.0
    %872 = vmatprep.subr.mxu0 0.0
    %873 = vmatpush1.xpose.msra.mxu0 0.0
    %874 = vmatprep.subr.mxu0 0.0
    %875 = vmatpush1.xpose.msra.mxu0 0.0
    %876 = vmatprep.subr.mxu0 0.0
    %877 = vmatpush1.xpose.msra.mxu0 0.0
    %878 = vmatprep.subr.mxu0 0.0
    %879 = vmatpush1.xpose.msra.mxu0 0.0
    %880 = vmatprep.subr.mxu0 0.0
    %881 = vmatpush1.xpose.msra.mxu0 0.0
    %882 = vmatprep.subr.mxu0 0.0
    %883 = vmatpush1.xpose.msra.mxu0 0.0
    %884 = vmatprep.subr.mxu0 0.0
    %885 = vmatpush1.xpose.msra.mxu0 0.0
    %886 = vmatprep.subr.mxu0 0.0
    %887 = vmatpush1.xpose.msra.mxu0 0.0
    %888 = vmatprep.subr.mxu0 0.0
    %889 = vmatpush1.xpose.msra.mxu0 0.0
    %890 = vmatprep.subr.mxu0 0.0
    %891 = vmatpush1.xpose.msra.mxu0 0.0
    %892 = vmatprep.subr.mxu0 0.0
    %893 = vmatpush1.xpose.msra.mxu0 0.0
    %894 = vmatprep.subr.mxu0 0.0
    %895 = vmatpush1.xpose.msra.mxu0 0.0
    %896 = vmatprep.subr.mxu0 0.0
    %897 = vmatpush1.xpose.msra.mxu0 0.0
    %898 = vmatprep.subr.mxu0 0.0
    %899 = vmatpush1.xpose.msra.mxu0 0.0
    %900 = vmatprep.subr.mxu0 0.0
    %901 = vmatpush1.xpose.msra.mxu0 0.0
    %902 = vmatprep.subr.mxu0 0.0
    %903 = vmatpush1.xpose.msra.mxu0 0.0
    %904 = vmatprep.subr.mxu0 0.0
    %905 = vmatpush1.xpose.msra.mxu0 0.0
    %906 = vmatprep.subr.mxu0 0.0
    %907 = vmatpush1.xpose.msra.mxu0 0.0
    %908 = vmatprep.subr.mxu0 0.0
    %909 = vmatpush1.xpose.msra.mxu0 0.0
    %910 = vmatprep.subr.mxu0 0.0
    %911 = vmatpush1.xpose.msra.mxu0 0.0
    %912 = vmatprep.subr.mxu0 0.0
    %913 = vmatpush1.xpose.msra.mxu0 0.0
    %914 = vmatprep.mubr.f32.mxu0 0.0
    %915 = vmatmul.mubr.f32.gmra.mrb[0].mxu0 %v846
    %v916 = vpop.f32.mrb[0].mxu0
    %v917 = vadd.f32 0.0, %v916
    %v918 = vpop.f32.mrb[0].mxu0
    %919 = vdwg.mxu0
    %920 = vrot.lane.b32.xlu0 %v358, 96
    %v921 = vpop.permute.xlu0 %920
    %v922 = vsel %vm389, %v358, 0
    %v924 = vsel %vm389, %v921, 0
    %926 = vmatprep.subr.mxu0 0.0
    %927 = vmatpush1.xpose.msra.mxu0 %v924
    %928 = vmatprep.subr.mxu0 0.0
    %929 = vmatpush1.xpose.msra.mxu0 0.0
    %930 = vmatprep.subr.mxu0 0.0
    %931 = vmatpush1.xpose.msra.mxu0 0.0
    %932 = vmatprep.subr.mxu0 0.0
    %933 = vmatpush1.xpose.msra.mxu0 0.0
    %934 = vmatprep.subr.mxu0 0.0
    %935 = vmatpush1.xpose.msra.mxu0 0.0
    %936 = vmatprep.subr.mxu0 0.0
    %937 = vmatpush1.xpose.msra.mxu0 0.0
    %938 = vmatprep.subr.mxu0 0.0
    %939 = vmatpush1.xpose.msra.mxu0 0.0
    %940 = vmatprep.subr.mxu0 0.0
    %941 = vmatpush1.xpose.msra.mxu0 0.0
    %942 = vmatprep.subr.mxu0 0.0
    %943 = vmatpush1.xpose.msra.mxu0 0.0
    %944 = vmatprep.subr.mxu0 0.0
    %945 = vmatpush1.xpose.msra.mxu0 0.0
    %946 = vmatprep.subr.mxu0 0.0
    %947 = vmatpush1.xpose.msra.mxu0 0.0
    %948 = vmatprep.subr.mxu0 0.0
    %949 = vmatpush1.xpose.msra.mxu0 0.0
    %950 = vmatprep.subr.mxu0 0.0
    %951 = vmatpush1.xpose.msra.mxu0 0.0
    %952 = vmatprep.subr.mxu0 0.0
    %953 = vmatpush1.xpose.msra.mxu0 0.0
    %954 = vmatprep.subr.mxu0 0.0
    %955 = vmatpush1.xpose.msra.mxu0 0.0
    %956 = vmatprep.subr.mxu0 0.0
    %957 = vmatpush1.xpose.msra.mxu0 0.0
    %958 = vmatprep.subr.mxu0 0.0
    %959 = vmatpush1.xpose.msra.mxu0 0.0
    %960 = vmatprep.subr.mxu0 0.0
    %961 = vmatpush1.xpose.msra.mxu0 0.0
    %962 = vmatprep.subr.mxu0 0.0
    %963 = vmatpush1.xpose.msra.mxu0 0.0
    %964 = vmatprep.subr.mxu0 0.0
    %965 = vmatpush1.xpose.msra.mxu0 0.0
    %966 = vmatprep.subr.mxu0 0.0
    %967 = vmatpush1.xpose.msra.mxu0 0.0
    %968 = vmatprep.subr.mxu0 0.0
    %969 = vmatpush1.xpose.msra.mxu0 0.0
    %970 = vmatprep.subr.mxu0 0.0
    %971 = vmatpush1.xpose.msra.mxu0 0.0
    %972 = vmatprep.subr.mxu0 0.0
    %973 = vmatpush1.xpose.msra.mxu0 0.0
    %974 = vmatprep.subr.mxu0 0.0
    %975 = vmatpush1.xpose.msra.mxu0 0.0
    %976 = vmatprep.subr.mxu0 0.0
    %977 = vmatpush1.xpose.msra.mxu0 0.0
    %978 = vmatprep.subr.mxu0 0.0
    %979 = vmatpush1.xpose.msra.mxu0 0.0
    %980 = vmatprep.subr.mxu0 0.0
    %981 = vmatpush1.xpose.msra.mxu0 0.0
    %982 = vmatprep.subr.mxu0 0.0
    %983 = vmatpush1.xpose.msra.mxu0 0.0
    %984 = vmatprep.subr.mxu0 0.0
    %985 = vmatpush1.xpose.msra.mxu0 0.0
    %986 = vmatprep.subr.mxu0 0.0
    %987 = vmatpush1.xpose.msra.mxu0 0.0
    %988 = vmatprep.subr.mxu0 0.0
    %989 = vmatpush1.xpose.msra.mxu0 0.0
    %990 = vmatprep.mubr.f32.mxu0 0.0
    %991 = vmatmul.mubr.f32.gmra.mrb[0].mxu0 %v922
    %v992 = vpop.f32.mrb[0].mxu0
    %v993 = vadd.f32 0.0, %v992
    %v994 = vpop.f32.mrb[0].mxu0
    %995 = vdwg.mxu0
    %v996 = vmul.f32 %v461, 0.25
    %v997 = vmul.f32 %v537, 0.25
    %v998 = vmul.f32 %v613, 0.25
    %v999 = vmul.f32 %v689, 0.25
    %v1000 = vmul.f32 %v765, 0.25
    %v1001 = vmul.f32 %v841, 0.25
    %v1002 = vmul.f32 %v917, 0.25
    %v1003 = vmul.f32 %v993, 0.25
    %v1004 = vlaneseq
    %v1005 = vshrl.u32 %v1004, 7
    %v1006 = vsub.s32 0, %v1005
    %v1007 = vrot.slane %v377, %v1006
    %v1008 = vlaneseq
    %v1009 = vshrl.u32 %v1008, 7
    %v1010 = vsub.s32 0, %v1009
    %v1011 = vrot.slane %v384, %v1010
    %v1012 = vlaneseq
    %v1013 = vshrl.u32 %v1012, 7
    %v1014 = vsub.s32 0, %v1013
    %v1015 = vrot.slane %v385, %v1014
    %v1016 = vlaneseq
    %v1017 = vshrl.u32 %v1016, 7
    %v1018 = vsub.s32 0, %v1017
    %v1019 = vrot.slane %v386, %v1018
    %v1024 = vadd.f32 %v996, %v1007
    %v1025 = vadd.f32 %v997, %v1011
    %v1026 = vadd.f32 %v998, %v1015
    %v1027 = vadd.f32 %v999, %v1019
    %v1028 = vadd.f32 %v1000, %v1007
    %v1029 = vadd.f32 %v1001, %v1011
    %v1030 = vadd.f32 %v1002, %v1015
    %v1031 = vadd.f32 %v1003, %v1019
    %vm1032 = vcmask 64512
    %v1033 = vsel %vm1032, %v1024, -inf
    %1034 = vmax.xlane.f32.xlu0 %v1033
    %v1035 = vpop.xlane.xlu0 %1034
    %v1036 = vsel %vm1032, %v1025, -inf
    %1037 = vmax.xlane.f32.xlu0 %v1036
    %v1038 = vpop.xlane.xlu0 %1037
    %v1039 = vsel %vm1032, %v1026, -inf
    %1040 = vmax.xlane.f32.xlu0 %v1039
    %v1041 = vpop.xlane.xlu0 %1040
    %v1042 = vsel %vm1032, %v1027, -inf
    %1043 = vmax.xlane.f32.xlu0 %v1042
    %v1044 = vpop.xlane.xlu0 %1043
    %v1045 = vsel %vm1032, %v1028, -inf
    %1046 = vmax.xlane.f32.xlu0 %v1045
    %v1047 = vpop.xlane.xlu0 %1046
    %v1048 = vsel %vm1032, %v1029, -inf
    %1049 = vmax.xlane.f32.xlu0 %v1048
    %v1050 = vpop.xlane.xlu0 %1049
    %v1051 = vsel %vm1032, %v1030, -inf
    %1052 = vmax.xlane.f32.xlu0 %v1051
    %v1053 = vpop.xlane.xlu0 %1052
    %v1054 = vsel %vm1032, %v1031, -inf
    %1055 = vmax.xlane.f32.xlu0 %v1054
    %v1056 = vpop.xlane.xlu0 %1055
    %v1057 = vsub.f32 %v1024, %v1035
    %v1058 = vsub.f32 %v1025, %v1038
    %v1059 = vsub.f32 %v1026, %v1041
    %v1060 = vsub.f32 %v1027, %v1044
    %v1061 = vsub.f32 %v1028, %v1047
    %v1062 = vsub.f32 %v1029, %v1050
    %v1063 = vsub.f32 %v1030, %v1053
    %v1064 = vsub.f32 %v1031, %v1056
    %v1065 = vmul.f32 %v1057, 1.442695
    %v1066 = vpow.pop %v1065
    %v1067 = vmul.f32 %v1058, 1.442695
    %v1068 = vpow.pop %v1067
    %v1069 = vmul.f32 %v1059, 1.442695
    %v1070 = vpow.pop %v1069
    %v1071 = vmul.f32 %v1060, 1.442695
    %v1072 = vpow.pop %v1071
    %v1073 = vmul.f32 %v1061, 1.442695
    %v1074 = vpow.pop %v1073
    %v1075 = vmul.f32 %v1062, 1.442695
    %v1076 = vpow.pop %v1075
    %v1077 = vmul.f32 %v1063, 1.442695
    %v1078 = vpow.pop %v1077
    %v1079 = vmul.f32 %v1064, 1.442695
    %v1080 = vpow.pop %v1079
    %v1081 = vsel %vm1032, %v1066, 0.0
    %1082 = vadd.xlane.f32.xlu0 %v1081
    %v1083 = vpop.xlane.xlu0 %1082
    %v1084 = vsel %vm1032, %v1068, 0.0
    %1085 = vadd.xlane.f32.xlu0 %v1084
    %v1086 = vpop.xlane.xlu0 %1085
    %v1087 = vsel %vm1032, %v1070, 0.0
    %1088 = vadd.xlane.f32.xlu0 %v1087
    %v1089 = vpop.xlane.xlu0 %1088
    %v1090 = vsel %vm1032, %v1072, 0.0
    %1091 = vadd.xlane.f32.xlu0 %v1090
    %v1092 = vpop.xlane.xlu0 %1091
    %v1093 = vsel %vm1032, %v1074, 0.0
    %1094 = vadd.xlane.f32.xlu0 %v1093
    %v1095 = vpop.xlane.xlu0 %1094
    %v1096 = vsel %vm1032, %v1076, 0.0
    %1097 = vadd.xlane.f32.xlu0 %v1096
    %v1098 = vpop.xlane.xlu0 %1097
    %v1099 = vsel %vm1032, %v1078, 0.0
    %1100 = vadd.xlane.f32.xlu0 %v1099
    %v1101 = vpop.xlane.xlu0 %1100
    %v1102 = vsel %vm1032, %v1080, 0.0
    %1103 = vadd.xlane.f32.xlu0 %v1102
    %v1104 = vpop.xlane.xlu0 %1103
    %v1105 = vrcp.pop %v1083
    %v1106 = vrcp.pop %v1086
    %v1107 = vrcp.pop %v1089
    %v1108 = vrcp.pop %v1092
    %v1109 = vrcp.pop %v1095
    %v1110 = vrcp.pop %v1098
    %v1111 = vrcp.pop %v1101
    %v1112 = vrcp.pop %v1104
    %v1113 = vmul.f32 %v1066, %v1105
    %v1114 = vmul.f32 %v1068, %v1106
    %v1115 = vmul.f32 %v1070, %v1107
    %v1116 = vmul.f32 %v1072, %v1108
    %v1117 = vmul.f32 %v1074, %v1109
    %v1118 = vmul.f32 %v1076, %v1110
    %v1119 = vmul.f32 %v1078, %v1111
    %v1120 = vmul.f32 %v1080, %v1112
    %1121 = vrot.lane.b32.xlu0 %v329, 64
    %v1122 = vpop.permute.xlu0 %1121
    %v1125 = vsel %vm1032, %v1113, 0
    %1127 = vmatprep.subr.mxu0 0.0
    %1128 = vmatpush1.msra.mxu0 %v1122
    %1129 = vmatprep.subr.mxu0 0.0
    %1130 = vmatpush1.msra.mxu0 0.0
    %1131 = vmatprep.subr.mxu0 0.0
    %1132 = vmatpush1.msra.mxu0 0.0
    %1133 = vmatprep.subr.mxu0 0.0
    %1134 = vmatpush1.msra.mxu0 0.0
    %1135 = vmatprep.subr.mxu0 0.0
    %1136 = vmatpush1.msra.mxu0 0.0
    %1137 = vmatprep.subr.mxu0 0.0
    %1138 = vmatpush1.msra.mxu0 0.0
    %1139 = vmatprep.subr.mxu0 0.0
    %1140 = vmatpush1.msra.mxu0 0.0
    %1141 = vmatprep.subr.mxu0 0.0
    %1142 = vmatpush1.msra.mxu0 0.0
    %1143 = vmatprep.subr.mxu0 0.0
    %1144 = vmatpush1.msra.mxu0 0.0
    %1145 = vmatprep.subr.mxu0 0.0
    %1146 = vmatpush1.msra.mxu0 0.0
    %1147 = vmatprep.subr.mxu0 0.0
    %1148 = vmatpush1.msra.mxu0 0.0
    %1149 = vmatprep.subr.mxu0 0.0
    %1150 = vmatpush1.msra.mxu0 0.0
    %1151 = vmatprep.subr.mxu0 0.0
    %1152 = vmatpush1.msra.mxu0 0.0
    %1153 = vmatprep.subr.mxu0 0.0
    %1154 = vmatpush1.msra.mxu0 0.0
    %1155 = vmatprep.subr.mxu0 0.0
    %1156 = vmatpush1.msra.mxu0 0.0
    %1157 = vmatprep.subr.mxu0 0.0
    %1158 = vmatpush1.msra.mxu0 0.0
    %1159 = vmatprep.subr.mxu0 0.0
    %1160 = vmatpush1.msra.mxu0 0.0
    %1161 = vmatprep.subr.mxu0 0.0
    %1162 = vmatpush1.msra.mxu0 0.0
    %1163 = vmatprep.subr.mxu0 0.0
    %1164 = vmatpush1.msra.mxu0 0.0
    %1165 = vmatprep.subr.mxu0 0.0
    %1166 = vmatpush1.msra.mxu0 0.0
    %1167 = vmatprep.subr.mxu0 0.0
    %1168 = vmatpush1.msra.mxu0 0.0
    %1169 = vmatprep.subr.mxu0 0.0
    %1170 = vmatpush1.msra.mxu0 0.0
    %1171 = vmatprep.subr.mxu0 0.0
    %1172 = vmatpush1.msra.mxu0 0.0
    %1173 = vmatprep.subr.mxu0 0.0
    %1174 = vmatpush1.msra.mxu0 0.0
    %1175 = vmatprep.subr.mxu0 0.0
    %1176 = vmatpush1.msra.mxu0 0.0
    %1177 = vmatprep.subr.mxu0 0.0
    %1178 = vmatpush1.msra.mxu0 0.0
    %1179 = vmatprep.subr.mxu0 0.0
    %1180 = vmatpush1.msra.mxu0 0.0
    %1181 = vmatprep.subr.mxu0 0.0
    %1182 = vmatpush1.msra.mxu0 0.0
    %1183 = vmatprep.subr.mxu0 0.0
    %1184 = vmatpush1.msra.mxu0 0.0
    %1185 = vmatprep.subr.mxu0 0.0
    %1186 = vmatpush1.msra.mxu0 0.0
    %1187 = vmatprep.subr.mxu0 0.0
    %1188 = vmatpush1.msra.mxu0 0.0
    %1189 = vmatprep.subr.mxu0 0.0
    %1190 = vmatpush1.msra.mxu0 0.0
    %1191 = vmatprep.mubr.f32.mxu0 0.0
    %1192 = vmatmul.mubr.f32.gmra.mrb[0].mxu0 %v1125
    %v1193 = vpop.f32.mrb[0].mxu0
    %v1194 = vadd.f32 0.0, %v1193
    %v1195 = vpop.f32.mrb[0].mxu0
    %1196 = vdwg.mxu0
    %1197 = vrot.lane.b32.xlu0 %v334, 64
    %v1198 = vpop.permute.xlu0 %1197
    %v1201 = vsel %vm1032, %v1114, 0
    %1203 = vmatprep.subr.mxu0 0.0
    %1204 = vmatpush1.msra.mxu0 %v1198
    %1205 = vmatprep.subr.mxu0 0.0
    %1206 = vmatpush1.msra.mxu0 0.0
    %1207 = vmatprep.subr.mxu0 0.0
    %1208 = vmatpush1.msra.mxu0 0.0
    %1209 = vmatprep.subr.mxu0 0.0
    %1210 = vmatpush1.msra.mxu0 0.0
    %1211 = vmatprep.subr.mxu0 0.0
    %1212 = vmatpush1.msra.mxu0 0.0
    %1213 = vmatprep.subr.mxu0 0.0
    %1214 = vmatpush1.msra.mxu0 0.0
    %1215 = vmatprep.subr.mxu0 0.0
    %1216 = vmatpush1.msra.mxu0 0.0
    %1217 = vmatprep.subr.mxu0 0.0
    %1218 = vmatpush1.msra.mxu0 0.0
    %1219 = vmatprep.subr.mxu0 0.0
    %1220 = vmatpush1.msra.mxu0 0.0
    %1221 = vmatprep.subr.mxu0 0.0
    %1222 = vmatpush1.msra.mxu0 0.0
    %1223 = vmatprep.subr.mxu0 0.0
    %1224 = vmatpush1.msra.mxu0 0.0
    %1225 = vmatprep.subr.mxu0 0.0
    %1226 = vmatpush1.msra.mxu0 0.0
    %1227 = vmatprep.subr.mxu0 0.0
    %1228 = vmatpush1.msra.mxu0 0.0
    %1229 = vmatprep.subr.mxu0 0.0
    %1230 = vmatpush1.msra.mxu0 0.0
    %1231 = vmatprep.subr.mxu0 0.0
    %1232 = vmatpush1.msra.mxu0 0.0
    %1233 = vmatprep.subr.mxu0 0.0
    %1234 = vmatpush1.msra.mxu0 0.0
    %1235 = vmatprep.subr.mxu0 0.0
    %1236 = vmatpush1.msra.mxu0 0.0
    %1237 = vmatprep.subr.mxu0 0.0
    %1238 = vmatpush1.msra.mxu0 0.0
    %1239 = vmatprep.subr.mxu0 0.0
    %1240 = vmatpush1.msra.mxu0 0.0
    %1241 = vmatprep.subr.mxu0 0.0
    %1242 = vmatpush1.msra.mxu0 0.0
    %1243 = vmatprep.subr.mxu0 0.0
    %1244 = vmatpush1.msra.mxu0 0.0
    %1245 = vmatprep.subr.mxu0 0.0
    %1246 = vmatpush1.msra.mxu0 0.0
    %1247 = vmatprep.subr.mxu0 0.0
    %1248 = vmatpush1.msra.mxu0 0.0
    %1249 = vmatprep.subr.mxu0 0.0
    %1250 = vmatpush1.msra.mxu0 0.0
    %1251 = vmatprep.subr.mxu0 0.0
    %1252 = vmatpush1.msra.mxu0 0.0
    %1253 = vmatprep.subr.mxu0 0.0
    %1254 = vmatpush1.msra.mxu0 0.0
    %1255 = vmatprep.subr.mxu0 0.0
    %1256 = vmatpush1.msra.mxu0 0.0
    %1257 = vmatprep.subr.mxu0 0.0
    %1258 = vmatpush1.msra.mxu0 0.0
    %1259 = vmatprep.subr.mxu0 0.0
    %1260 = vmatpush1.msra.mxu0 0.0
    %1261 = vmatprep.subr.mxu0 0.0
    %1262 = vmatpush1.msra.mxu0 0.0
    %1263 = vmatprep.subr.mxu0 0.0
    %1264 = vmatpush1.msra.mxu0 0.0
    %1265 = vmatprep.subr.mxu0 0.0
    %1266 = vmatpush1.msra.mxu0 0.0
    %1267 = vmatprep.mubr.f32.mxu0 0.0
    %1268 = vmatmul.mubr.f32.gmra.mrb[0].mxu0 %v1201
    %v1269 = vpop.f32.mrb[0].mxu0
    %v1270 = vadd.f32 0.0, %v1269
    %v1271 = vpop.f32.mrb[0].mxu0
    %1272 = vdwg.mxu0
    %1273 = vrot.lane.b32.xlu0 %v339, 64
    %v1274 = vpop.permute.xlu0 %1273
    %v1277 = vsel %vm1032, %v1115, 0
    %1279 = vmatprep.subr.mxu0 0.0
    %1280 = vmatpush1.msra.mxu0 %v1274
    %1281 = vmatprep.subr.mxu0 0.0
    %1282 = vmatpush1.msra.mxu0 0.0
    %1283 = vmatprep.subr.mxu0 0.0
    %1284 = vmatpush1.msra.mxu0 0.0
    %1285 = vmatprep.subr.mxu0 0.0
    %1286 = vmatpush1.msra.mxu0 0.0
    %1287 = vmatprep.subr.mxu0 0.0
    %1288 = vmatpush1.msra.mxu0 0.0
    %1289 = vmatprep.subr.mxu0 0.0
    %1290 = vmatpush1.msra.mxu0 0.0
    %1291 = vmatprep.subr.mxu0 0.0
    %1292 = vmatpush1.msra.mxu0 0.0
    %1293 = vmatprep.subr.mxu0 0.0
    %1294 = vmatpush1.msra.mxu0 0.0
    %1295 = vmatprep.subr.mxu0 0.0
    %1296 = vmatpush1.msra.mxu0 0.0
    %1297 = vmatprep.subr.mxu0 0.0
    %1298 = vmatpush1.msra.mxu0 0.0
    %1299 = vmatprep.subr.mxu0 0.0
    %1300 = vmatpush1.msra.mxu0 0.0
    %1301 = vmatprep.subr.mxu0 0.0
    %1302 = vmatpush1.msra.mxu0 0.0
    %1303 = vmatprep.subr.mxu0 0.0
    %1304 = vmatpush1.msra.mxu0 0.0
    %1305 = vmatprep.subr.mxu0 0.0
    %1306 = vmatpush1.msra.mxu0 0.0
    %1307 = vmatprep.subr.mxu0 0.0
    %1308 = vmatpush1.msra.mxu0 0.0
    %1309 = vmatprep.subr.mxu0 0.0
    %1310 = vmatpush1.msra.mxu0 0.0
    %1311 = vmatprep.subr.mxu0 0.0
    %1312 = vmatpush1.msra.mxu0 0.0
    %1313 = vmatprep.subr.mxu0 0.0
    %1314 = vmatpush1.msra.mxu0 0.0
    %1315 = vmatprep.subr.mxu0 0.0
    %1316 = vmatpush1.msra.mxu0 0.0
    %1317 = vmatprep.subr.mxu0 0.0
    %1318 = vmatpush1.msra.mxu0 0.0
    %1319 = vmatprep.subr.mxu0 0.0
    %1320 = vmatpush1.msra.mxu0 0.0
    %1321 = vmatprep.subr.mxu0 0.0
    %1322 = vmatpush1.msra.mxu0 0.0
    %1323 = vmatprep.subr.mxu0 0.0
    %1324 = vmatpush1.msra.mxu0 0.0
    %1325 = vmatprep.subr.mxu0 0.0
    %1326 = vmatpush1.msra.mxu0 0.0
    %1327 = vmatprep.subr.mxu0 0.0
    %1328 = vmatpush1.msra.mxu0 0.0
    %1329 = vmatprep.subr.mxu0 0.0
    %1330 = vmatpush1.msra.mxu0 0.0
    %1331 = vmatprep.subr.mxu0 0.0
    %1332 = vmatpush1.msra.mxu0 0.0
    %1333 = vmatprep.subr.mxu0 0.0
    %1334 = vmatpush1.msra.mxu0 0.0
    %1335 = vmatprep.subr.mxu0 0.0
    %1336 = vmatpush1.msra.mxu0 0.0
    %1337 = vmatprep.subr.mxu0 0.0
    %1338 = vmatpush1.msra.mxu0 0.0
    %1339 = vmatprep.subr.mxu0 0.0
    %1340 = vmatpush1.msra.mxu0 0.0
    %1341 = vmatprep.subr.mxu0 0.0
    %1342 = vmatpush1.msra.mxu0 0.0
    %1343 = vmatprep.mubr.f32.mxu0 0.0
    %1344 = vmatmul.mubr.f32.gmra.mrb[0].mxu0 %v1277
    %v1345 = vpop.f32.mrb[0].mxu0
    %v1346 = vadd.f32 0.0, %v1345
    %v1347 = vpop.f32.mrb[0].mxu0
    %1348 = vdwg.mxu0
    %1349 = vrot.lane.b32.xlu0 %v344, 64
    %v1350 = vpop.permute.xlu0 %1349
    %v1353 = vsel %vm1032, %v1116, 0
    %1355 = vmatprep.subr.mxu0 0.0
    %1356 = vmatpush1.msra.mxu0 %v1350
    %1357 = vmatprep.subr.mxu0 0.0
    %1358 = vmatpush1.msra.mxu0 0.0
    %1359 = vmatprep.subr.mxu0 0.0
    %1360 = vmatpush1.msra.mxu0 0.0
    %1361 = vmatprep.subr.mxu0 0.0
    %1362 = vmatpush1.msra.mxu0 0.0
    %1363 = vmatprep.subr.mxu0 0.0
    %1364 = vmatpush1.msra.mxu0 0.0
    %1365 = vmatprep.subr.mxu0 0.0
    %1366 = vmatpush1.msra.mxu0 0.0
    %1367 = vmatprep.subr.mxu0 0.0
    %1368 = vmatpush1.msra.mxu0 0.0
    %1369 = vmatprep.subr.mxu0 0.0
    %1370 = vmatpush1.msra.mxu0 0.0
    %1371 = vmatprep.subr.mxu0 0.0
    %1372 = vmatpush1.msra.mxu0 0.0
    %1373 = vmatprep.subr.mxu0 0.0
    %1374 = vmatpush1.msra.mxu0 0.0
    %1375 = vmatprep.subr.mxu0 0.0
    %1376 = vmatpush1.msra.mxu0 0.0
    %1377 = vmatprep.subr.mxu0 0.0
    %1378 = vmatpush1.msra.mxu0 0.0
    %1379 = vmatprep.subr.mxu0 0.0
    %1380 = vmatpush1.msra.mxu0 0.0
    %1381 = vmatprep.subr.mxu0 0.0
    %1382 = vmatpush1.msra.mxu0 0.0
    %1383 = vmatprep.subr.mxu0 0.0
    %1384 = vmatpush1.msra.mxu0 0.0
    %1385 = vmatprep.subr.mxu0 0.0
    %1386 = vmatpush1.msra.mxu0 0.0
    %1387 = vmatprep.subr.mxu0 0.0
    %1388 = vmatpush1.msra.mxu0 0.0
    %1389 = vmatprep.subr.mxu0 0.0
    %1390 = vmatpush1.msra.mxu0 0.0
    %1391 = vmatprep.subr.mxu0 0.0
    %1392 = vmatpush1.msra.mxu0 0.0
    %1393 = vmatprep.subr.mxu0 0.0
    %1394 = vmatpush1.msra.mxu0 0.0
    %1395 = vmatprep.subr.mxu0 0.0
    %1396 = vmatpush1.msra.mxu0 0.0
    %1397 = vmatprep.subr.mxu0 0.0
    %1398 = vmatpush1.msra.mxu0 0.0
    %1399 = vmatprep.subr.mxu0 0.0
    %1400 = vmatpush1.msra.mxu0 0.0
    %1401 = vmatprep.subr.mxu0 0.0
    %1402 = vmatpush1.msra.mxu0 0.0
    %1403 = vmatprep.subr.mxu0 0.0
    %1404 = vmatpush1.msra.mxu0 0.0
    %1405 = vmatprep.subr.mxu0 0.0
    %1406 = vmatpush1.msra.mxu0 0.0
    %1407 = vmatprep.subr.mxu0 0.0
    %1408 = vmatpush1.msra.mxu0 0.0
    %1409 = vmatprep.subr.mxu0 0.0
    %1410 = vmatpush1.msra.mxu0 0.0
    %1411 = vmatprep.subr.mxu0 0.0
    %1412 = vmatpush1.msra.mxu0 0.0
    %1413 = vmatprep.subr.mxu0 0.0
    %1414 = vmatpush1.msra.mxu0 0.0
    %1415 = vmatprep.subr.mxu0 0.0
    %1416 = vmatpush1.msra.mxu0 0.0
    %1417 = vmatprep.subr.mxu0 0.0
    %1418 = vmatpush1.msra.mxu0 0.0
    %1419 = vmatprep.mubr.f32.mxu0 0.0
    %1420 = vmatmul.mubr.f32.gmra.mrb[0].mxu0 %v1353
    %v1421 = vpop.f32.mrb[0].mxu0
    %v1422 = vadd.f32 0.0, %v1421
    %v1423 = vpop.f32.mrb[0].mxu0
    %1424 = vdwg.mxu0
    %1425 = vrot.lane.b32.xlu0 %v352, 64
    %v1426 = vpop.permute.xlu0 %1425
    %v1429 = vsel %vm1032, %v1117, 0
    %1431 = vmatprep.subr.mxu0 0.0
    %1432 = vmatpush1.msra.mxu0 %v1426
    %1433 = vmatprep.subr.mxu0 0.0
    %1434 = vmatpush1.msra.mxu0 0.0
    %1435 = vmatprep.subr.mxu0 0.0
    %1436 = vmatpush1.msra.mxu0 0.0
    %1437 = vmatprep.subr.mxu0 0.0
    %1438 = vmatpush1.msra.mxu0 0.0
    %1439 = vmatprep.subr.mxu0 0.0
    %1440 = vmatpush1.msra.mxu0 0.0
    %1441 = vmatprep.subr.mxu0 0.0
    %1442 = vmatpush1.msra.mxu0 0.0
    %1443 = vmatprep.subr.mxu0 0.0
    %1444 = vmatpush1.msra.mxu0 0.0
    %1445 = vmatprep.subr.mxu0 0.0
    %1446 = vmatpush1.msra.mxu0 0.0
    %1447 = vmatprep.subr.mxu0 0.0
    %1448 = vmatpush1.msra.mxu0 0.0
    %1449 = vmatprep.subr.mxu0 0.0
    %1450 = vmatpush1.msra.mxu0 0.0
    %1451 = vmatprep.subr.mxu0 0.0
    %1452 = vmatpush1.msra.mxu0 0.0
    %1453 = vmatprep.subr.mxu0 0.0
    %1454 = vmatpush1.msra.mxu0 0.0
    %1455 = vmatprep.subr.mxu0 0.0
    %1456 = vmatpush1.msra.mxu0 0.0
    %1457 = vmatprep.subr.mxu0 0.0
    %1458 = vmatpush1.msra.mxu0 0.0
    %1459 = vmatprep.subr.mxu0 0.0
    %1460 = vmatpush1.msra.mxu0 0.0
    %1461 = vmatprep.subr.mxu0 0.0
    %1462 = vmatpush1.msra.mxu0 0.0
    %1463 = vmatprep.subr.mxu0 0.0
    %1464 = vmatpush1.msra.mxu0 0.0
    %1465 = vmatprep.subr.mxu0 0.0
    %1466 = vmatpush1.msra.mxu0 0.0
    %1467 = vmatprep.subr.mxu0 0.0
    %1468 = vmatpush1.msra.mxu0 0.0
    %1469 = vmatprep.subr.mxu0 0.0
    %1470 = vmatpush1.msra.mxu0 0.0
    %1471 = vmatprep.subr.mxu0 0.0
    %1472 = vmatpush1.msra.mxu0 0.0
    %1473 = vmatprep.subr.mxu0 0.0
    %1474 = vmatpush1.msra.mxu0 0.0
    %1475 = vmatprep.subr.mxu0 0.0
    %1476 = vmatpush1.msra.mxu0 0.0
    %1477 = vmatprep.subr.mxu0 0.0
    %1478 = vmatpush1.msra.mxu0 0.0
    %1479 = vmatprep.subr.mxu0 0.0
    %1480 = vmatpush1.msra.mxu0 0.0
    %1481 = vmatprep.subr.mxu0 0.0
    %1482 = vmatpush1.msra.mxu0 0.0
    %1483 = vmatprep.subr.mxu0 0.0
    %1484 = vmatpush1.msra.mxu0 0.0
    %1485 = vmatprep.subr.mxu0 0.0
    %1486 = vmatpush1.msra.mxu0 0.0
    %1487 = vmatprep.subr.mxu0 0.0
    %1488 = vmatpush1.msra.mxu0 0.0
    %1489 = vmatprep.subr.mxu0 0.0
    %1490 = vmatpush1.msra.mxu0 0.0
    %1491 = vmatprep.subr.mxu0 0.0
    %1492 = vmatpush1.msra.mxu0 0.0
    %1493 = vmatprep.subr.mxu0 0.0
    %1494 = vmatpush1.msra.mxu0 0.0
    %1495 = vmatprep.mubr.f32.mxu0 0.0
    %1496 = vmatmul.mubr.f32.gmra.mrb[0].mxu0 %v1429
    %v1497 = vpop.f32.mrb[0].mxu0
    %v1498 = vadd.f32 0.0, %v1497
    %v1499 = vpop.f32.mrb[0].mxu0
    %1500 = vdwg.mxu0
    %1501 = vrot.lane.b32.xlu0 %v354, 64
    %v1502 = vpop.permute.xlu0 %1501
    %v1505 = vsel %vm1032, %v1118, 0
    %1507 = vmatprep.subr.mxu0 0.0
    %1508 = vmatpush1.msra.mxu0 %v1502
    %1509 = vmatprep.subr.mxu0 0.0
    %1510 = vmatpush1.msra.mxu0 0.0
    %1511 = vmatprep.subr.mxu0 0.0
    %1512 = vmatpush1.msra.mxu0 0.0
    %1513 = vmatprep.subr.mxu0 0.0
    %1514 = vmatpush1.msra.mxu0 0.0
    %1515 = vmatprep.subr.mxu0 0.0
    %1516 = vmatpush1.msra.mxu0 0.0
    %1517 = vmatprep.subr.mxu0 0.0
    %1518 = vmatpush1.msra.mxu0 0.0
    %1519 = vmatprep.subr.mxu0 0.0
    %1520 = vmatpush1.msra.mxu0 0.0
    %1521 = vmatprep.subr.mxu0 0.0
    %1522 = vmatpush1.msra.mxu0 0.0
    %1523 = vmatprep.subr.mxu0 0.0
    %1524 = vmatpush1.msra.mxu0 0.0
    %1525 = vmatprep.subr.mxu0 0.0
    %1526 = vmatpush1.msra.mxu0 0.0
    %1527 = vmatprep.subr.mxu0 0.0
    %1528 = vmatpush1.msra.mxu0 0.0
    %1529 = vmatprep.subr.mxu0 0.0
    %1530 = vmatpush1.msra.mxu0 0.0
    %1531 = vmatprep.subr.mxu0 0.0
    %1532 = vmatpush1.msra.mxu0 0.0
    %1533 = vmatprep.subr.mxu0 0.0
    %1534 = vmatpush1.msra.mxu0 0.0
    %1535 = vmatprep.subr.mxu0 0.0
    %1536 = vmatpush1.msra.mxu0 0.0
    %1537 = vmatprep.subr.mxu0 0.0
    %1538 = vmatpush1.msra.mxu0 0.0
    %1539 = vmatprep.subr.mxu0 0.0
    %1540 = vmatpush1.msra.mxu0 0.0
    %1541 = vmatprep.subr.mxu0 0.0
    %1542 = vmatpush1.msra.mxu0 0.0
    %1543 = vmatprep.subr.mxu0 0.0
    %1544 = vmatpush1.msra.mxu0 0.0
    %1545 = vmatprep.subr.mxu0 0.0
    %1546 = vmatpush1.msra.mxu0 0.0
    %1547 = vmatprep.subr.mxu0 0.0
    %1548 = vmatpush1.msra.mxu0 0.0
    %1549 = vmatprep.subr.mxu0 0.0
    %1550 = vmatpush1.msra.mxu0 0.0
    %1551 = vmatprep.subr.mxu0 0.0
    %1552 = vmatpush1.msra.mxu0 0.0
    %1553 = vmatprep.subr.mxu0 0.0
    %1554 = vmatpush1.msra.mxu0 0.0
    %1555 = vmatprep.subr.mxu0 0.0
    %1556 = vmatpush1.msra.mxu0 0.0
    %1557 = vmatprep.subr.mxu0 0.0
    %1558 = vmatpush1.msra.mxu0 0.0
    %1559 = vmatprep.subr.mxu0 0.0
    %1560 = vmatpush1.msra.mxu0 0.0
    %1561 = vmatprep.subr.mxu0 0.0
    %1562 = vmatpush1.msra.mxu0 0.0
    %1563 = vmatprep.subr.mxu0 0.0
    %1564 = vmatpush1.msra.mxu0 0.0
    %1565 = vmatprep.subr.mxu0 0.0
    %1566 = vmatpush1.msra.mxu0 0.0
    %1567 = vmatprep.subr.mxu0 0.0
    %1568 = vmatpush1.msra.mxu0 0.0
    %1569 = vmatprep.subr.mxu0 0.0
    %1570 = vmatpush1.msra.mxu0 0.0
    %1571 = vmatprep.mubr.f32.mxu0 0.0
    %1572 = vmatmul.mubr.f32.gmra.mrb[0].mxu0 %v1505
    %v1573 = vpop.f32.mrb[0].mxu0
    %v1574 = vadd.f32 0.0, %v1573
    %v1575 = vpop.f32.mrb[0].mxu0
    %1576 = vdwg.mxu0
    %1577 = vrot.lane.b32.xlu0 %v356, 64
    %v1578 = vpop.permute.xlu0 %1577
    %v1581 = vsel %vm1032, %v1119, 0
    %1583 = vmatprep.subr.mxu0 0.0
    %1584 = vmatpush1.msra.mxu0 %v1578
    %1585 = vmatprep.subr.mxu0 0.0
    %1586 = vmatpush1.msra.mxu0 0.0
    %1587 = vmatprep.subr.mxu0 0.0
    %1588 = vmatpush1.msra.mxu0 0.0
    %1589 = vmatprep.subr.mxu0 0.0
    %1590 = vmatpush1.msra.mxu0 0.0
    %1591 = vmatprep.subr.mxu0 0.0
    %1592 = vmatpush1.msra.mxu0 0.0
    %1593 = vmatprep.subr.mxu0 0.0
    %1594 = vmatpush1.msra.mxu0 0.0
    %1595 = vmatprep.subr.mxu0 0.0
    %1596 = vmatpush1.msra.mxu0 0.0
    %1597 = vmatprep.subr.mxu0 0.0
    %1598 = vmatpush1.msra.mxu0 0.0
    %1599 = vmatprep.subr.mxu0 0.0
    %1600 = vmatpush1.msra.mxu0 0.0
    %1601 = vmatprep.subr.mxu0 0.0
    %1602 = vmatpush1.msra.mxu0 0.0
    %1603 = vmatprep.subr.mxu0 0.0
    %1604 = vmatpush1.msra.mxu0 0.0
    %1605 = vmatprep.subr.mxu0 0.0
    %1606 = vmatpush1.msra.mxu0 0.0
    %1607 = vmatprep.subr.mxu0 0.0
    %1608 = vmatpush1.msra.mxu0 0.0
    %1609 = vmatprep.subr.mxu0 0.0
    %1610 = vmatpush1.msra.mxu0 0.0
    %1611 = vmatprep.subr.mxu0 0.0
    %1612 = vmatpush1.msra.mxu0 0.0
    %1613 = vmatprep.subr.mxu0 0.0
    %1614 = vmatpush1.msra.mxu0 0.0
    %1615 = vmatprep.subr.mxu0 0.0
    %1616 = vmatpush1.msra.mxu0 0.0
    %1617 = vmatprep.subr.mxu0 0.0
    %1618 = vmatpush1.msra.mxu0 0.0
    %1619 = vmatprep.subr.mxu0 0.0
    %1620 = vmatpush1.msra.mxu0 0.0
    %1621 = vmatprep.subr.mxu0 0.0
    %1622 = vmatpush1.msra.mxu0 0.0
    %1623 = vmatprep.subr.mxu0 0.0
    %1624 = vmatpush1.msra.mxu0 0.0
    %1625 = vmatprep.subr.mxu0 0.0
    %1626 = vmatpush1.msra.mxu0 0.0
    %1627 = vmatprep.subr.mxu0 0.0
    %1628 = vmatpush1.msra.mxu0 0.0
    %1629 = vmatprep.subr.mxu0 0.0
    %1630 = vmatpush1.msra.mxu0 0.0
    %1631 = vmatprep.subr.mxu0 0.0
    %1632 = vmatpush1.msra.mxu0 0.0
    %1633 = vmatprep.subr.mxu0 0.0
    %1634 = vmatpush1.msra.mxu0 0.0
    %1635 = vmatprep.subr.mxu0 0.0
    %1636 = vmatpush1.msra.mxu0 0.0
    %1637 = vmatprep.subr.mxu0 0.0
    %1638 = vmatpush1.msra.mxu0 0.0
    %1639 = vmatprep.subr.mxu0 0.0
    %1640 = vmatpush1.msra.mxu0 0.0
    %1641 = vmatprep.subr.mxu0 0.0
    %1642 = vmatpush1.msra.mxu0 0.0
    %1643 = vmatprep.subr.mxu0 0.0
    %1644 = vmatpush1.msra.mxu0 0.0
    %1645 = vmatprep.subr.mxu0 0.0
    %1646 = vmatpush1.msra.mxu0 0.0
    %1647 = vmatprep.mubr.f32.mxu0 0.0
    %1648 = vmatmul.mubr.f32.gmra.mrb[0].mxu0 %v1581
    %v1649 = vpop.f32.mrb[0].mxu0
    %v1650 = vadd.f32 0.0, %v1649
    %v1651 = vpop.f32.mrb[0].mxu0
    %1652 = vdwg.mxu0
    %1653 = vrot.lane.b32.xlu0 %v358, 64
    %v1654 = vpop.permute.xlu0 %1653
    %v1657 = vsel %vm1032, %v1120, 0
    %1659 = vmatprep.subr.mxu0 0.0
    %1660 = vmatpush1.msra.mxu0 %v1654
    %1661 = vmatprep.subr.mxu0 0.0
    %1662 = vmatpush1.msra.mxu0 0.0
    %1663 = vmatprep.subr.mxu0 0.0
    %1664 = vmatpush1.msra.mxu0 0.0
    %1665 = vmatprep.subr.mxu0 0.0
    %1666 = vmatpush1.msra.mxu0 0.0
    %1667 = vmatprep.subr.mxu0 0.0
    %1668 = vmatpush1.msra.mxu0 0.0
    %1669 = vmatprep.subr.mxu0 0.0
    %1670 = vmatpush1.msra.mxu0 0.0
    %1671 = vmatprep.subr.mxu0 0.0
    %1672 = vmatpush1.msra.mxu0 0.0
    %1673 = vmatprep.subr.mxu0 0.0
    %1674 = vmatpush1.msra.mxu0 0.0
    %1675 = vmatprep.subr.mxu0 0.0
    %1676 = vmatpush1.msra.mxu0 0.0
    %1677 = vmatprep.subr.mxu0 0.0
    %1678 = vmatpush1.msra.mxu0 0.0
    %1679 = vmatprep.subr.mxu0 0.0
    %1680 = vmatpush1.msra.mxu0 0.0
    %1681 = vmatprep.subr.mxu0 0.0
    %1682 = vmatpush1.msra.mxu0 0.0
    %1683 = vmatprep.subr.mxu0 0.0
    %1684 = vmatpush1.msra.mxu0 0.0
    %1685 = vmatprep.subr.mxu0 0.0
    %1686 = vmatpush1.msra.mxu0 0.0
    %1687 = vmatprep.subr.mxu0 0.0
    %1688 = vmatpush1.msra.mxu0 0.0
    %1689 = vmatprep.subr.mxu0 0.0
    %1690 = vmatpush1.msra.mxu0 0.0
    %1691 = vmatprep.subr.mxu0 0.0
    %1692 = vmatpush1.msra.mxu0 0.0
    %1693 = vmatprep.subr.mxu0 0.0
    %1694 = vmatpush1.msra.mxu0 0.0
    %1695 = vmatprep.subr.mxu0 0.0
    %1696 = vmatpush1.msra.mxu0 0.0
    %1697 = vmatprep.subr.mxu0 0.0
    %1698 = vmatpush1.msra.mxu0 0.0
    %1699 = vmatprep.subr.mxu0 0.0
    %1700 = vmatpush1.msra.mxu0 0.0
    %1701 = vmatprep.subr.mxu0 0.0
    %1702 = vmatpush1.msra.mxu0 0.0
    %1703 = vmatprep.subr.mxu0 0.0
    %1704 = vmatpush1.msra.mxu0 0.0
    %1705 = vmatprep.subr.mxu0 0.0
    %1706 = vmatpush1.msra.mxu0 0.0
    %1707 = vmatprep.subr.mxu0 0.0
    %1708 = vmatpush1.msra.mxu0 0.0
    %1709 = vmatprep.subr.mxu0 0.0
    %1710 = vmatpush1.msra.mxu0 0.0
    %1711 = vmatprep.subr.mxu0 0.0
    %1712 = vmatpush1.msra.mxu0 0.0
    %1713 = vmatprep.subr.mxu0 0.0
    %1714 = vmatpush1.msra.mxu0 0.0
    %1715 = vmatprep.subr.mxu0 0.0
    %1716 = vmatpush1.msra.mxu0 0.0
    %1717 = vmatprep.subr.mxu0 0.0
    %1718 = vmatpush1.msra.mxu0 0.0
    %1719 = vmatprep.subr.mxu0 0.0
    %1720 = vmatpush1.msra.mxu0 0.0
    %1721 = vmatprep.subr.mxu0 0.0
    %1722 = vmatpush1.msra.mxu0 0.0
    %1723 = vmatprep.mubr.f32.mxu0 0.0
    %1724 = vmatmul.mubr.f32.gmra.mrb[0].mxu0 %v1657
    %v1725 = vpop.f32.mrb[0].mxu0
    %v1726 = vadd.f32 0.0, %v1725
    %v1727 = vpop.f32.mrb[0].mxu0
    %1728 = vdwg.mxu0
    %1733 = vrot.lane.b32.xlu0 %v1498, 16
    %v1734 = vpop.permute.xlu0 %1733
    %1735 = vrot.lane.b32.xlu0 %v1574, 16
    %v1736 = vpop.permute.xlu0 %1735
    %1737 = vrot.lane.b32.xlu0 %v1650, 16
    %v1738 = vpop.permute.xlu0 %1737
    %1739 = vrot.lane.b32.xlu0 %v1726, 16
    %v1740 = vpop.permute.xlu0 %1739
    %v1745 = vsel %vm389, %v1194, %v1734
    %v1746 = vsel %vm389, %v1270, %v1736
    %v1747 = vsel %vm389, %v1346, %v1738
    %v1748 = vsel %vm389, %v1422, %v1740
    %v1749 = vld [vmem:[#allocation2 + $0xc0] sm:$0xff]
    %v1750 = vld [vmem:[#allocation2 + $0xc8] sm:$0xff]
    %v1751 = vld [vmem:[#allocation2 + $0xd0] sm:$0xff]
    %v1752 = vld [vmem:[#allocation2 + $0xd8] sm:$0xff]
    %v1753 = vld [vmem:[%s4 + $0x3] sm:$0x1]
    %v1754 = vlaneseq
    %v1755 = vshrl.u32 %v1754, 7
    %v1756 = vsub.s32 0, %v1755
    %v1757 = vrot.slane %v1753, %v1756
    %v1759 = vsel %vm171, %v1745, 0
    %v1762 = vsel %vm171, %v1746, 0
    %v1765 = vsel %vm171, %v1747, 0
    %v1768 = vsel %vm171, %v1748, 0
    %1770 = vmatprep.subr.mxu0 0.0
    %1771 = vmatpush1.msra.mxu0 %v1749
    %1772 = vmatprep.subr.mxu0 0.0
    %1773 = vmatpush1.msra.mxu0 %v1750
    %1774 = vmatprep.subr.mxu0 0.0
    %1775 = vmatpush1.msra.mxu0 %v1751
    %1776 = vmatprep.subr.mxu0 0.0
    %1777 = vmatpush1.msra.mxu0 %v1752
    %1778 = vmatprep.subr.mxu0 0.0
    %1779 = vmatpush1.msra.mxu0 0.0
    %1780 = vmatprep.subr.mxu0 0.0
    %1781 = vmatpush1.msra.mxu0 0.0
    %1782 = vmatprep.subr.mxu0 0.0
    %1783 = vmatpush1.msra.mxu0 0.0
    %1784 = vmatprep.subr.mxu0 0.0
    %1785 = vmatpush1.msra.mxu0 0.0
    %1786 = vmatprep.subr.mxu0 0.0
    %1787 = vmatpush1.msra.mxu0 0.0
    %1788 = vmatprep.subr.mxu0 0.0
    %1789 = vmatpush1.msra.mxu0 0.0
    %1790 = vmatprep.subr.mxu0 0.0
    %1791 = vmatpush1.msra.mxu0 0.0
    %1792 = vmatprep.subr.mxu0 0.0
    %1793 = vmatpush1.msra.mxu0 0.0
    %1794 = vmatprep.subr.mxu0 0.0
    %1795 = vmatpush1.msra.mxu0 0.0
    %1796 = vmatprep.subr.mxu0 0.0
    %1797 = vmatpush1.msra.mxu0 0.0
    %1798 = vmatprep.subr.mxu0 0.0
    %1799 = vmatpush1.msra.mxu0 0.0
    %1800 = vmatprep.subr.mxu0 0.0
    %1801 = vmatpush1.msra.mxu0 0.0
    %1802 = vmatprep.subr.mxu0 0.0
    %1803 = vmatpush1.msra.mxu0 0.0
    %1804 = vmatprep.subr.mxu0 0.0
    %1805 = vmatpush1.msra.mxu0 0.0
    %1806 = vmatprep.subr.mxu0 0.0
    %1807 = vmatpush1.msra.mxu0 0.0
    %1808 = vmatprep.subr.mxu0 0.0
    %1809 = vmatpush1.msra.mxu0 0.0
    %1810 = vmatprep.subr.mxu0 0.0
    %1811 = vmatpush1.msra.mxu0 0.0
    %1812 = vmatprep.subr.mxu0 0.0
    %1813 = vmatpush1.msra.mxu0 0.0
    %1814 = vmatprep.subr.mxu0 0.0
    %1815 = vmatpush1.msra.mxu0 0.0
    %1816 = vmatprep.subr.mxu0 0.0
    %1817 = vmatpush1.msra.mxu0 0.0
    %1818 = vmatprep.subr.mxu0 0.0
    %1819 = vmatpush1.msra.mxu0 0.0
    %1820 = vmatprep.subr.mxu0 0.0
    %1821 = vmatpush1.msra.mxu0 0.0
    %1822 = vmatprep.subr.mxu0 0.0
    %1823 = vmatpush1.msra.mxu0 0.0
    %1824 = vmatprep.subr.mxu0 0.0
    %1825 = vmatpush1.msra.mxu0 0.0
    %1826 = vmatprep.subr.mxu0 0.0
    %1827 = vmatpush1.msra.mxu0 0.0
    %1828 = vmatprep.subr.mxu0 0.0
    %1829 = vmatpush1.msra.mxu0 0.0
    %1830 = vmatprep.subr.mxu0 0.0
    %1831 = vmatpush1.msra.mxu0 0.0
    %1832 = vmatprep.subr.mxu0 0.0
    %1833 = vmatpush1.msra.mxu0 0.0
    %1834 = vmatprep.mubr.f32.mxu0 0.0
    %1835 = vmatmul.mubr.f32.gmra.mrb[0].mxu0 %v1759
    %v1836 = vpop.f32.mrb[0].mxu0
    %v1837 = vadd.f32 %v1757, %v1836
    %v1838 = vpop.f32.mrb[0].mxu0
    %1839 = vmatprep.mubr.f32.mxu0 0.0
    %1840 = vmatmul.mubr.f32.gmra.mrb[0].mxu0 %v1762
    %v1841 = vpop.f32.mrb[0].mxu0
    %v1842 = vadd.f32 %v1757, %v1841
    %v1843 = vpop.f32.mrb[0].mxu0
    %1844 = vmatprep.mubr.f32.mxu0 0.0
    %1845 = vmatmul.mubr.f32.gmra.mrb[0].mxu0 %v1765
    %v1846 = vpop.f32.mrb[0].mxu0
    %v1847 = vadd.f32 %v1757, %v1846
    %v1848 = vpop.f32.mrb[0].mxu0
    %1849 = vmatprep.mubr.f32.mxu0 0.0
    %1850 = vmatmul.mubr.f32.gmra.mrb[0].mxu0 %v1768
    %v1851 = vpop.f32.mrb[0].mxu0
    %v1852 = vadd.f32 %v1757, %v1851
    %v1853 = vpop.f32.mrb[0].mxu0
    %1854 = vdwg.mxu0
    %v1855 = vadd.f32 %v237, %v1837
    %v1856 = vadd.f32 %v238, %v1842
    %v1857 = vadd.f32 %v239, %v1847
    %v1858 = vadd.f32 %v240, %v1852
    %v1859 = vld [vmem:[%s4 + $0x4] sm:$0x1]
    %v1860 = vld [vmem:[%s4 + $0x5] sm:$0x1]
    %v1861 = vsel %vm171, %v1855, 0.0
    %1862 = vadd.xlane.f32.xlu0 %v1861
    %v1863 = vpop.xlane.xlu0 %1862
    %v1864 = vsel %vm171, %v1856, 0.0
    %1865 = vadd.xlane.f32.xlu0 %v1864
    %v1866 = vpop.xlane.xlu0 %1865
    %v1867 = vsel %vm171, %v1857, 0.0
    %1868 = vadd.xlane.f32.xlu0 %v1867
    %v1869 = vpop.xlane.xlu0 %1868
    %v1870 = vsel %vm171, %v1858, 0.0
    %1871 = vadd.xlane.f32.xlu0 %v1870
    %v1872 = vpop.xlane.xlu0 %1871
    %v1873 = vmul.f32 %v1863, %v184
    %v1874 = vmul.f32 %v1866, %v184
    %v1875 = vmul.f32 %v1869, %v184
    %v1876 = vmul.f32 %v1872, %v184
    %v1877 = vsub.f32 %v1855, %v1873
    %v1878 = vsub.f32 %v1856, %v1874
    %v1879 = vsub.f32 %v1857, %v1875
    %v1880 = vsub.f32 %v1858, %v1876
    %v1881 = vmul.f32 %v1877, %v1877
    %v1882 = vmul.f32 %v1878, %v1878
    %v1883 = vmul.f32 %v1879, %v1879
    %v1884 = vmul.f32 %v1880, %v1880
    %v1885 = vsel %vm171, %v1881, 0.0
    %1886 = vadd.xlane.f32.xlu0 %v1885
    %v1887 = vpop.xlane.xlu0 %1886
    %v1888 = vsel %vm171, %v1882, 0.0
    %1889 = vadd.xlane.f32.xlu0 %v1888
    %v1890 = vpop.xlane.xlu0 %1889
    %v1891 = vsel %vm171, %v1883, 0.0
    %1892 = vadd.xlane.f32.xlu0 %v1891
    %v1893 = vpop.xlane.xlu0 %1892
    %v1894 = vsel %vm171, %v1884, 0.0
    %1895 = vadd.xlane.f32.xlu0 %v1894
    %v1896 = vpop.xlane.xlu0 %1895
    %v1897 = vmul.f32 %v1887, %v184
    %v1898 = vmul.f32 %v1890, %v184
    %v1899 = vmul.f32 %v1893, %v184
    %v1900 = vmul.f32 %v1896, %v184
    %v1901 = vadd.f32 %v1897, 1e-12
    %v1902 = vadd.f32 %v1898, 1e-12
    %v1903 = vadd.f32 %v1899, 1e-12
    %v1904 = vadd.f32 %v1900, 1e-12
    %v1905 = vrsqrt.pop %v1901
    %v1906 = vrsqrt.pop %v1902
    %v1907 = vrsqrt.pop %v1903
    %v1908 = vrsqrt.pop %v1904
    %v1909 = vmul.f32 %v1877, %v1905
    %v1910 = vmul.f32 %v1878, %v1906
    %v1911 = vmul.f32 %v1879, %v1907
    %v1912 = vmul.f32 %v1880, %v1908
    %v1913 = vlaneseq
    %v1914 = vshrl.u32 %v1913, 7
    %v1915 = vsub.s32 0, %v1914
    %v1916 = vrot.slane %v1859, %v1915
    %v1917 = vmul.f32 %v1909, %v1916
    %v1918 = vmul.f32 %v1910, %v1916
    %v1919 = vmul.f32 %v1911, %v1916
    %v1920 = vmul.f32 %v1912, %v1916
    %v1921 = vlaneseq
    %v1922 = vshrl.u32 %v1921, 7
    %v1923 = vsub.s32 0, %v1922
    %v1924 = vrot.slane %v1860, %v1923
    %v1925 = vadd.f32 %v1917, %v1924
    %v1926 = vadd.f32 %v1918, %v1924
    %v1927 = vadd.f32 %v1919, %v1924
    %v1928 = vadd.f32 %v1920, %v1924
    %v1929 = vld [vmem:[#allocation2 + $0xe0] sm:$0xff]
    %v1930 = vld [vmem:[#allocation2 + $0xe8] sm:$0xff]
    %v1931 = vld [vmem:[#allocation2 + $0xf0] sm:$0xff]
    %v1932 = vld [vmem:[#allocation2 + $0xf8] sm:$0xff]
    %v1933 = vld [vmem:[%s4 + $0x6] sm:$0x1]
    %v1934 = vlaneseq
    %v1935 = vshrl.u32 %v1934, 7
    %v1936 = vsub.s32 0, %v1935
    %v1937 = vrot.slane %v1933, %v1936
    %v1939 = vsel %vm171, %v1925, 0
    %v1942 = vsel %vm171, %v1926, 0
    %v1945 = vsel %vm171, %v1927, 0
    %v1948 = vsel %vm171, %v1928, 0
    %1950 = vmatprep.subr.mxu0 0.0
    %1951 = vmatpush1.msra.mxu0 %v1929
    %1952 = vmatprep.subr.mxu0 0.0
    %1953 = vmatpush1.msra.mxu0 %v1930
    %1954 = vmatprep.subr.mxu0 0.0
    %1955 = vmatpush1.msra.mxu0 %v1931
    %1956 = vmatprep.subr.mxu0 0.0
    %1957 = vmatpush1.msra.mxu0 %v1932
    %1958 = vmatprep.subr.mxu0 0.0
    %1959 = vmatpush1.msra.mxu0 0.0
    %1960 = vmatprep.subr.mxu0 0.0
    %1961 = vmatpush1.msra.mxu0 0.0
    %1962 = vmatprep.subr.mxu0 0.0
    %1963 = vmatpush1.msra.mxu0 0.0
    %1964 = vmatprep.subr.mxu0 0.0
    %1965 = vmatpush1.msra.mxu0 0.0
    %1966 = vmatprep.subr.mxu0 0.0
    %1967 = vmatpush1.msra.mxu0 0.0
    %1968 = vmatprep.subr.mxu0 0.0
    %1969 = vmatpush1.msra.mxu0 0.0
    %1970 = vmatprep.subr.mxu0 0.0
    %1971 = vmatpush1.msra.mxu0 0.0
    %1972 = vmatprep.subr.mxu0 0.0
    %1973 = vmatpush1.msra.mxu0 0.0
    %1974 = vmatprep.subr.mxu0 0.0
    %1975 = vmatpush1.msra.mxu0 0.0
    %1976 = vmatprep.subr.mxu0 0.0
    %1977 = vmatpush1.msra.mxu0 0.0
    %1978 = vmatprep.subr.mxu0 0.0
    %1979 = vmatpush1.msra.mxu0 0.0
    %1980 = vmatprep.subr.mxu0 0.0
    %1981 = vmatpush1.msra.mxu0 0.0
    %1982 = vmatprep.subr.mxu0 0.0
    %1983 = vmatpush1.msra.mxu0 0.0
    %1984 = vmatprep.subr.mxu0 0.0
    %1985 = vmatpush1.msra.mxu0 0.0
    %1986 = vmatprep.subr.mxu0 0.0
    %1987 = vmatpush1.msra.mxu0 0.0
    %1988 = vmatprep.subr.mxu0 0.0
    %1989 = vmatpush1.msra.mxu0 0.0
    %1990 = vmatprep.subr.mxu0 0.0
    %1991 = vmatpush1.msra.mxu0 0.0
    %1992 = vmatprep.subr.mxu0 0.0
    %1993 = vmatpush1.msra.mxu0 0.0
    %1994 = vmatprep.subr.mxu0 0.0
    %1995 = vmatpush1.msra.mxu0 0.0
    %1996 = vmatprep.subr.mxu0 0.0
    %1997 = vmatpush1.msra.mxu0 0.0
    %1998 = vmatprep.subr.mxu0 0.0
    %1999 = vmatpush1.msra.mxu0 0.0
    %2000 = vmatprep.subr.mxu0 0.0
    %2001 = vmatpush1.msra.mxu0 0.0
    %2002 = vmatprep.subr.mxu0 0.0
    %2003 = vmatpush1.msra.mxu0 0.0
    %2004 = vmatprep.subr.mxu0 0.0
    %2005 = vmatpush1.msra.mxu0 0.0
    %2006 = vmatprep.subr.mxu0 0.0
    %2007 = vmatpush1.msra.mxu0 0.0
    %2008 = vmatprep.subr.mxu0 0.0
    %2009 = vmatpush1.msra.mxu0 0.0
    %2010 = vmatprep.subr.mxu0 0.0
    %2011 = vmatpush1.msra.mxu0 0.0
    %2012 = vmatprep.subr.mxu0 0.0
    %2013 = vmatpush1.msra.mxu0 0.0
    %2014 = vmatprep.mubr.f32.mxu0 0.0
    %2015 = vmatmul.mubr.f32.gmra.mrb[0].mxu0 %v1939
    %v2016 = vpop.f32.mrb[0].mxu0
    %v2017 = vadd.f32 %v1937, %v2016
    %v2018 = vpop.f32.mrb[0].mxu0
    %2019 = vmatprep.mubr.f32.mxu0 0.0
    %2020 = vmatmul.mubr.f32.gmra.mrb[0].mxu0 %v1942
    %v2021 = vpop.f32.mrb[0].mxu0
    %v2022 = vadd.f32 %v1937, %v2021
    %v2023 = vpop.f32.mrb[0].mxu0
    %2024 = vmatprep.mubr.f32.mxu0 0.0
    %2025 = vmatmul.mubr.f32.gmra.mrb[0].mxu0 %v1945
    %v2026 = vpop.f32.mrb[0].mxu0
    %v2027 = vadd.f32 %v1937, %v2026
    %v2028 = vpop.f32.mrb[0].mxu0
    %2029 = vmatprep.mubr.f32.mxu0 0.0
    %2030 = vmatmul.mubr.f32.gmra.mrb[0].mxu0 %v1948
    %v2031 = vpop.f32.mrb[0].mxu0
    %v2032 = vadd.f32 %v1937, %v2031
    %v2033 = vpop.f32.mrb[0].mxu0
    %2034 = vdwg.mxu0
    %v2035 = vmul.f32 %v2017, 0.5
    %v2036 = vmul.f32 %v2022, 0.5
    %v2037 = vmul.f32 %v2027, 0.5
    %v2038 = vmul.f32 %v2032, 0.5
    %v2039 = vmul.f32 %v2017, 0.044715
    %v2040 = vmul.f32 %v2022, 0.044715
    %v2041 = vmul.f32 %v2027, 0.044715
    %v2042 = vmul.f32 %v2032, 0.044715
    %v2043 = vmul.f32 %v2039, %v2017
    %v2044 = vmul.f32 %v2040, %v2022
    %v2045 = vmul.f32 %v2041, %v2027
    %v2046 = vmul.f32 %v2042, %v2032
    %v2047 = vmul.f32 %v2043, %v2017
    %v2048 = vmul.f32 %v2044, %v2022
    %v2049 = vmul.f32 %v2045, %v2027
    %v2050 = vmul.f32 %v2046, %v2032
    %v2051 = vadd.f32 %v2017, %v2047
    %v2052 = vadd.f32 %v2022, %v2048
    %v2053 = vadd.f32 %v2027, %v2049
    %v2054 = vadd.f32 %v2032, %v2050
    %v2055 = vmul.f32 %v2051, 0.7978846
    %v2056 = vmul.f32 %v2052, 0.7978846
    %v2057 = vmul.f32 %v2053, 0.7978846
    %v2058 = vmul.f32 %v2054, 0.7978846
    %v2059 = vtanh.pop %v2055
    %v2060 = vtanh.pop %v2056
    %v2061 = vtanh.pop %v2057
    %v2062 = vtanh.pop %v2058
    %v2063 = vadd.f32 %v2059, 1.0
    %v2064 = vadd.f32 %v2060, 1.0
    %v2065 = vadd.f32 %v2061, 1.0
    %v2066 = vadd.f32 %v2062, 1.0
    %v2067 = vmul.f32 %v2035, %v2063
    %v2068 = vmul.f32 %v2036, %v2064
    %v2069 = vmul.f32 %v2037, %v2065
    %v2070 = vmul.f32 %v2038, %v2066
    %v2071 = vld [vmem:[#allocation2 + $0x100] sm:$0xff]
    %v2072 = vld [vmem:[#allocation2 + $0x108] sm:$0xff]
    %v2073 = vld [vmem:[#allocation2 + $0x110] sm:$0xff]
    %v2074 = vld [vmem:[#allocation2 + $0x118] sm:$0xff]
    %v2075 = vld [vmem:[#allocation2 + $0x120] sm:$0xff]
    %v2076 = vld [vmem:[#allocation2 + $0x128] sm:$0xff]
    %v2077 = vld [vmem:[#allocation2 + $0x130] sm:$0xff]
    %v2078 = vld [vmem:[#allocation2 + $0x138] sm:$0xff]
    %v2079 = vld [vmem:[%s4 + $0x7] sm:$0x1]
    %v2080 = vlaneseq
    %v2081 = vshrl.u32 %v2080, 7
    %v2082 = vsub.s32 0, %v2081
    %v2083 = vrot.slane %v2079, %v2082
    %vm2084 = vcmask 523264
    %v2086 = vsel %vm2084, %v2067, 0
    %v2089 = vsel %vm2084, %v2068, 0
    %v2092 = vsel %vm2084, %v2069, 0
    %v2095 = vsel %vm2084, %v2070, 0
    %2097 = vmatprep.subr.mxu0 0.0
    %2098 = vmatpush1.msra.mxu0 %v2071
    %2099 = vmatprep.subr.mxu0 0.0
    %2100 = vmatpush1.msra.mxu0 %v2072
    %2101 = vmatprep.subr.mxu0 0.0
    %2102 = vmatpush1.msra.mxu0 %v2073
    %2103 = vmatprep.subr.mxu0 0.0
    %2104 = vmatpush1.msra.mxu0 %v2074
    %2105 = vmatprep.subr.mxu0 0.0
    %2106 = vmatpush1.msra.mxu0 %v2075
    %2107 = vmatprep.subr.mxu0 0.0
    %2108 = vmatpush1.msra.mxu0 %v2076
    %2109 = vmatprep.subr.mxu0 0.0
    %2110 = vmatpush1.msra.mxu0 %v2077
    %2111 = vmatprep.subr.mxu0 0.0
    %2112 = vmatpush1.msra.mxu0 %v2078
    %2113 = vmatprep.subr.mxu0 0.0
    %2114 = vmatpush1.msra.mxu0 0.0
    %2115 = vmatprep.subr.mxu0 0.0
    %2116 = vmatpush1.msra.mxu0 0.0
    %2117 = vmatprep.subr.mxu0 0.0
    %2118 = vmatpush1.msra.mxu0 0.0
    %2119 = vmatprep.subr.mxu0 0.0
    %2120 = vmatpush1.msra.mxu0 0.0
    %2121 = vmatprep.subr.mxu0 0.0
    %2122 = vmatpush1.msra.mxu0 0.0
    %2123 = vmatprep.subr.mxu0 0.0
    %2124 = vmatpush1.msra.mxu0 0.0
    %2125 = vmatprep.subr.mxu0 0.0
    %2126 = vmatpush1.msra.mxu0 0.0
    %2127 = vmatprep.subr.mxu0 0.0
    %2128 = vmatpush1.msra.mxu0 0.0
    %2129 = vmatprep.subr.mxu0 0.0
    %2130 = vmatpush1.msra.mxu0 0.0
    %2131 = vmatprep.subr.mxu0 0.0
    %2132 = vmatpush1.msra.mxu0 0.0
    %2133 = vmatprep.subr.mxu0 0.0
    %2134 = vmatpush1.msra.mxu0 0.0
    %2135 = vmatprep.subr.mxu0 0.0
    %2136 = vmatpush1.msra.mxu0 0.0
    %2137 = vmatprep.subr.mxu0 0.0
    %2138 = vmatpush1.msra.mxu0 0.0
    %2139 = vmatprep.subr.mxu0 0.0
    %2140 = vmatpush1.msra.mxu0 0.0
    %2141 = vmatprep.subr.mxu0 0.0
    %2142 = vmatpush1.msra.mxu0 0.0
    %2143 = vmatprep.subr.mxu0 0.0
    %2144 = vmatpush1.msra.mxu0 0.0
    %2145 = vmatprep.subr.mxu0 0.0
    %2146 = vmatpush1.msra.mxu0 0.0
    %2147 = vmatprep.subr.mxu0 0.0
    %2148 = vmatpush1.msra.mxu0 0.0
    %2149 = vmatprep.subr.mxu0 0.0
    %2150 = vmatpush1.msra.mxu0 0.0
    %2151 = vmatprep.subr.mxu0 0.0
    %2152 = vmatpush1.msra.mxu0 0.0
    %2153 = vmatprep.subr.mxu0 0.0
    %2154 = vmatpush1.msra.mxu0 0.0
    %2155 = vmatprep.subr.mxu0 0.0
    %2156 = vmatpush1.msra.mxu0 0.0
    %2157 = vmatprep.subr.mxu0 0.0
    %2158 = vmatpush1.msra.mxu0 0.0
    %2159 = vmatprep.subr.mxu0 0.0
    %2160 = vmatpush1.msra.mxu0 0.0
    %2161 = vmatprep.mubr.f32.mxu0 0.0
    %2162 = vmatmul.mubr.f32.gmra.mrb[0].mxu0 %v2086
    %v2163 = vpop.f32.mrb[0].mxu0
    %v2164 = vadd.f32 %v2083, %v2163
    %v2165 = vpop.f32.mrb[0].mxu0
    %2166 = vmatprep.mubr.f32.mxu0 0.0
    %2167 = vmatmul.mubr.f32.gmra.mrb[0].mxu0 %v2089
    %v2168 = vpop.f32.mrb[0].mxu0
    %v2169 = vadd.f32 %v2083, %v2168
    %v2170 = vpop.f32.mrb[0].mxu0
    %2171 = vmatprep.mubr.f32.mxu0 0.0
    %2172 = vmatmul.mubr.f32.gmra.mrb[0].mxu0 %v2092
    %v2173 = vpop.f32.mrb[0].mxu0
    %v2174 = vadd.f32 %v2083, %v2173
    %v2175 = vpop.f32.mrb[0].mxu0
    %2176 = vmatprep.mubr.f32.mxu0 0.0
    %2177 = vmatmul.mubr.f32.gmra.mrb[0].mxu0 %v2095
    %v2178 = vpop.f32.mrb[0].mxu0
    %v2179 = vadd.f32 %v2083, %v2178
    %v2180 = vpop.f32.mrb[0].mxu0
    %2181 = vdwg.mxu0
    %v2182 = vadd.f32 %v1925, %v2164
    %v2183 = vadd.f32 %v1926, %v2169
    %v2184 = vadd.f32 %v1927, %v2174
    %v2185 = vadd.f32 %v1928, %v2179
    %v2186 = vld [vmem:[%s4 + $0x8] sm:$0x1]
    %v2187 = vld [vmem:[%s4 + $0x9] sm:$0x1]
    %v2188 = vsel %vm171, %v2182, 0.0
    %2189 = vadd.xlane.f32.xlu0 %v2188
    %v2190 = vpop.xlane.xlu0 %2189
    %v2191 = vsel %vm171, %v2183, 0.0
    %2192 = vadd.xlane.f32.xlu0 %v2191
    %v2193 = vpop.xlane.xlu0 %2192
    %v2194 = vsel %vm171, %v2184, 0.0
    %2195 = vadd.xlane.f32.xlu0 %v2194
    %v2196 = vpop.xlane.xlu0 %2195
    %v2197 = vsel %vm171, %v2185, 0.0
    %2198 = vadd.xlane.f32.xlu0 %v2197
    %v2199 = vpop.xlane.xlu0 %2198
    %v2200 = vmul.f32 %v2190, %v184
    %v2201 = vmul.f32 %v2193, %v184
    %v2202 = vmul.f32 %v2196, %v184
    %v2203 = vmul.f32 %v2199, %v184
    %v2204 = vsub.f32 %v2182, %v2200
    %v2205 = vsub.f32 %v2183, %v2201
    %v2206 = vsub.f32 %v2184, %v2202
    %v2207 = vsub.f32 %v2185, %v2203
    %v2208 = vmul.f32 %v2204, %v2204
    %v2209 = vmul.f32 %v2205, %v2205
    %v2210 = vmul.f32 %v2206, %v2206
    %v2211 = vmul.f32 %v2207, %v2207
    %v2212 = vsel %vm171, %v2208, 0.0
    %2213 = vadd.xlane.f32.xlu0 %v2212
    %v2214 = vpop.xlane.xlu0 %2213
    %v2215 = vsel %vm171, %v2209, 0.0
    %2216 = vadd.xlane.f32.xlu0 %v2215
    %v2217 = vpop.xlane.xlu0 %2216
    %v2218 = vsel %vm171, %v2210, 0.0
    %2219 = vadd.xlane.f32.xlu0 %v2218
    %v2220 = vpop.xlane.xlu0 %2219
    %v2221 = vsel %vm171, %v2211, 0.0
    %2222 = vadd.xlane.f32.xlu0 %v2221
    %v2223 = vpop.xlane.xlu0 %2222
    %v2224 = vmul.f32 %v2214, %v184
    %v2225 = vmul.f32 %v2217, %v184
    %v2226 = vmul.f32 %v2220, %v184
    %v2227 = vmul.f32 %v2223, %v184
    %v2228 = vadd.f32 %v2224, 1e-12
    %v2229 = vadd.f32 %v2225, 1e-12
    %v2230 = vadd.f32 %v2226, 1e-12
    %v2231 = vadd.f32 %v2227, 1e-12
    %v2232 = vrsqrt.pop %v2228
    %v2233 = vrsqrt.pop %v2229
    %v2234 = vrsqrt.pop %v2230
    %v2235 = vrsqrt.pop %v2231
    %v2236 = vmul.f32 %v2204, %v2232
    %v2237 = vmul.f32 %v2205, %v2233
    %v2238 = vmul.f32 %v2206, %v2234
    %v2239 = vmul.f32 %v2207, %v2235
    %v2240 = vlaneseq
    %v2241 = vshrl.u32 %v2240, 7
    %v2242 = vsub.s32 0, %v2241
    %v2243 = vrot.slane %v2186, %v2242
    %v2244 = vmul.f32 %v2236, %v2243
    %v2245 = vmul.f32 %v2237, %v2243
    %v2246 = vmul.f32 %v2238, %v2243
    %v2247 = vmul.f32 %v2239, %v2243
    %v2248 = vlaneseq
    %v2249 = vshrl.u32 %v2248, 7
    %v2250 = vsub.s32 0, %v2249
    %v2251 = vrot.slane %v2187, %v2250
    %v2252 = vadd.f32 %v2244, %v2251
    %v2253 = vadd.f32 %v2245, %v2251
    %v2254 = vadd.f32 %v2246, %v2251
    %v2255 = vadd.f32 %v2247, %v2251
    %v2256 = vld [vmem:[#allocation2 + $0x140] sm:$0xff]
    %v2257 = vld [vmem:[#allocation2 + $0x148] sm:$0xff]
    %v2258 = vld [vmem:[#allocation2 + $0x150] sm:$0xff]
    %v2259 = vld [vmem:[#allocation2 + $0x158] sm:$0xff]
    %v2260 = vld [vmem:[%s4 + $0xa] sm:$0x1]
    %v2261 = vlaneseq
    %v2262 = vshrl.u32 %v2261, 7
    %v2263 = vsub.s32 0, %v2262
    %v2264 = vrot.slane %v2260, %v2263
    %v2269 = vrot.slane %v2253, 7
    %vm2270 = vcmask 1041409
    %v2271 = vsel %vm2270, %v2269, %v2252
    %v2272 = vrot.slane %v2254, 6
    %vm2273 = vcmask 1042434
    %v2274 = vsel %vm2273, %v2272, %v2271
    %v2275 = vrot.slane %v2255, 5
    %vm2276 = vcmask 1043459
    %v2277 = vsel %vm2276, %v2275, %v2274
    %v2278 = vsel %vm171, %v2277, 0
    %2280 = vmatprep.subr.mxu0 0.0
    %2281 = vmatpush1.msra.mxu0 %v2256
    %2282 = vmatprep.subr.mxu0 0.0
    %2283 = vmatpush1.msra.mxu0 %v2257
    %2284 = vmatprep.subr.mxu0 0.0
    %2285 = vmatpush1.msra.mxu0 %v2258
    %2286 = vmatprep.subr.mxu0 0.0
    %2287 = vmatpush1.msra.mxu0 %v2259
    %2288 = vmatprep.subr.mxu0 0.0
    %2289 = vmatpush1.msra.mxu0 0.0
    %2290 = vmatprep.subr.mxu0 0.0
    %2291 = vmatpush1.msra.mxu0 0.0
    %2292 = vmatprep.subr.mxu0 0.0
    %2293 = vmatpush1.msra.mxu0 0.0
    %2294 = vmatprep.subr.mxu0 0.0
    %2295 = vmatpush1.msra.mxu0 0.0
    %2296 = vmatprep.subr.mxu0 0.0
    %2297 = vmatpush1.msra.mxu0 0.0
    %2298 = vmatprep.subr.mxu0 0.0
    %2299 = vmatpush1.msra.mxu0 0.0
    %2300 = vmatprep.subr.mxu0 0.0
    %2301 = vmatpush1.msra.mxu0 0.0
    %2302 = vmatprep.subr.mxu0 0.0
    %2303 = vmatpush1.msra.mxu0 0.0
    %2304 = vmatprep.subr.mxu0 0.0
    %2305 = vmatpush1.msra.mxu0 0.0
    %2306 = vmatprep.subr.mxu0 0.0
    %2307 = vmatpush1.msra.mxu0 0.0
    %2308 = vmatprep.subr.mxu0 0.0
    %2309 = vmatpush1.msra.mxu0 0.0
    %2310 = vmatprep.subr.mxu0 0.0
    %2311 = vmatpush1.msra.mxu0 0.0
    %2312 = vmatprep.subr.mxu0 0.0
    %2313 = vmatpush1.msra.mxu0 0.0
    %2314 = vmatprep.subr.mxu0 0.0
    %2315 = vmatpush1.msra.mxu0 0.0
    %2316 = vmatprep.subr.mxu0 0.0
    %2317 = vmatpush1.msra.mxu0 0.0
    %2318 = vmatprep.subr.mxu0 0.0
    %2319 = vmatpush1.msra.mxu0 0.0
    %2320 = vmatprep.subr.mxu0 0.0
    %2321 = vmatpush1.msra.mxu0 0.0
    %2322 = vmatprep.subr.mxu0 0.0
    %2323 = vmatpush1.msra.mxu0 0.0
    %2324 = vmatprep.subr.mxu0 0.0
    %2325 = vmatpush1.msra.mxu0 0.0
    %2326 = vmatprep.subr.mxu0 0.0
    %2327 = vmatpush1.msra.mxu0 0.0
    %2328 = vmatprep.subr.mxu0 0.0
    %2329 = vmatpush1.msra.mxu0 0.0
    %2330 = vmatprep.subr.mxu0 0.0
    %2331 = vmatpush1.msra.mxu0 0.0
    %2332 = vmatprep.subr.mxu0 0.0
    %2333 = vmatpush1.msra.mxu0 0.0
    %2334 = vmatprep.subr.mxu0 0.0
    %2335 = vmatpush1.msra.mxu0 0.0
    %2336 = vmatprep.subr.mxu0 0.0
    %2337 = vmatpush1.msra.mxu0 0.0
    %2338 = vmatprep.subr.mxu0 0.0
    %2339 = vmatpush1.msra.mxu0 0.0
    %2340 = vmatprep.subr.mxu0 0.0
    %2341 = vmatpush1.msra.mxu0 0.0
    %2342 = vmatprep.subr.mxu0 0.0
    %2343 = vmatpush1.msra.mxu0 0.0
    %2344 = vmatprep.mubr.f32.mxu0 0.0
    %2345 = vmatmul.mubr.f32.gmra.mrb[0].mxu0 %v2278
    %v2346 = vpop.f32.mrb[0].mxu0
    %v2347 = vadd.f32 %v2264, %v2346
    %v2348 = vpop.f32.mrb[0].mxu0
    %2349 = vdwg.mxu0
    %v2350 = vtanh.pop %v2347
    %v2351 = vld [vmem:[%s2] sm:$0x3]
    %vm2352 = vcmask 31744
    %v2354 = vsel %vm2352, %v2351, 0
    %vm2356 = vcmask 1043456
    %v2358 = vsel %vm2356, %v2350, 0
    %2360 = vmatprep.subr.mxu0 0.0
    %2361 = vmatpush1.msra.mxu0 %v2358
    %2362 = vmatprep.subr.mxu0 0.0
    %2363 = vmatpush1.msra.mxu0 0.0
    %2364 = vmatprep.subr.mxu0 0.0
    %2365 = vmatpush1.msra.mxu0 0.0
    %2366 = vmatprep.subr.mxu0 0.0
    %2367 = vmatpush1.msra.mxu0 0.0
    %2368 = vmatprep.subr.mxu0 0.0
    %2369 = vmatpush1.msra.mxu0 0.0
    %2370 = vmatprep.subr.mxu0 0.0
    %2371 = vmatpush1.msra.mxu0 0.0
    %2372 = vmatprep.subr.mxu0 0.0
    %2373 = vmatpush1.msra.mxu0 0.0
    %2374 = vmatprep.subr.mxu0 0.0
    %2375 = vmatpush1.msra.mxu0 0.0
    %2376 = vmatprep.subr.mxu0 0.0
    %2377 = vmatpush1.msra.mxu0 0.0
    %2378 = vmatprep.subr.mxu0 0.0
    %2379 = vmatpush1.msra.mxu0 0.0
    %2380 = vmatprep.subr.mxu0 0.0
    %2381 = vmatpush1.msra.mxu0 0.0
    %2382 = vmatprep.subr.mxu0 0.0
    %2383 = vmatpush1.msra.mxu0 0.0
    %2384 = vmatprep.subr.mxu0 0.0
    %2385 = vmatpush1.msra.mxu0 0.0
    %2386 = vmatprep.subr.mxu0 0.0
    %2387 = vmatpush1.msra.mxu0 0.0
    %2388 = vmatprep.subr.mxu0 0.0
    %2389 = vmatpush1.msra.mxu0 0.0
    %2390 = vmatprep.subr.mxu0 0.0
    %2391 = vmatpush1.msra.mxu0 0.0
    %2392 = vmatprep.subr.mxu0 0.0
    %2393 = vmatpush1.msra.mxu0 0.0
    %2394 = vmatprep.subr.mxu0 0.0
    %2395 = vmatpush1.msra.mxu0 0.0
    %2396 = vmatprep.subr.mxu0 0.0
    %2397 = vmatpush1.msra.mxu0 0.0
    %2398 = vmatprep.subr.mxu0 0.0
    %2399 = vmatpush1.msra.mxu0 0.0
    %2400 = vmatprep.subr.mxu0 0.0
    %2401 = vmatpush1.msra.mxu0 0.0
    %2402 = vmatprep.subr.mxu0 0.0
    %2403 = vmatpush1.msra.mxu0 0.0
    %2404 = vmatprep.subr.mxu0 0.0
    %2405 = vmatpush1.msra.mxu0 0.0
    %2406 = vmatprep.subr.mxu0 0.0
    %2407 = vmatpush1.msra.mxu0 0.0
    %2408 = vmatprep.subr.mxu0 0.0
    %2409 = vmatpush1.msra.mxu0 0.0
    %2410 = vmatprep.subr.mxu0 0.0
    %2411 = vmatpush1.msra.mxu0 0.0
    %2412 = vmatprep.subr.mxu0 0.0
    %2413 = vmatpush1.msra.mxu0 0.0
    %2414 = vmatprep.subr.mxu0 0.0
    %2415 = vmatpush1.msra.mxu0 0.0
    %2416 = vmatprep.subr.mxu0 0.0
    %2417 = vmatpush1.msra.mxu0 0.0
    %2418 = vmatprep.subr.mxu0 0.0
    %2419 = vmatpush1.msra.mxu0 0.0
    %2420 = vmatprep.subr.mxu0 0.0
    %2421 = vmatpush1.msra.mxu0 0.0
    %2422 = vmatprep.subr.mxu0 0.0
    %2423 = vmatpush1.msra.mxu0 0.0
    %2424 = vmatprep.mubr.f32.mxu0 0.0
    %2425 = vmatmul.mubr.f32.gmra.mrb[0].mxu0 %v2354
    %v2426 = vpop.f32.mrb[0].mxu0
    %v2427 = vadd.f32 0.0, %v2426
    %v2428 = vpop.f32.mrb[0].mxu0
    %2429 = vdwg.mxu0
    %v2430 = vld [vmem:[#allocation2 + $0x160] sm:$0xff]
    %v2431 = vld [vmem:[#allocation2 + $0x168] sm:$0xff]
    %v2432 = vld [vmem:[#allocation2 + $0x170] sm:$0xff]
    %v2433 = vld [vmem:[#allocation2 + $0x178] sm:$0xff]
    %v2434 = vld [vmem:[%s4 + $0xb] sm:$0x1]
    %v2435 = vlaneseq
    %v2436 = vshrl.u32 %v2435, 7
    %v2437 = vsub.s32 0, %v2436
    %v2438 = vrot.slane %v2434, %v2437
    %v2440 = vsel %vm171, %v2427, 0
    %2442 = vmatprep.subr.mxu0 0.0
    %2443 = vmatpush1.msra.mxu0 %v2430
    %2444 = vmatprep.subr.mxu0 0.0
    %2445 = vmatpush1.msra.mxu0 %v2431
    %2446 = vmatprep.subr.mxu0 0.0
    %2447 = vmatpush1.msra.mxu0 %v2432
    %2448 = vmatprep.subr.mxu0 0.0
    %2449 = vmatpush1.msra.mxu0 %v2433
    %2450 = vmatprep.subr.mxu0 0.0
    %2451 = vmatpush1.msra.mxu0 0.0
    %2452 = vmatprep.subr.mxu0 0.0
    %2453 = vmatpush1.msra.mxu0 0.0
    %2454 = vmatprep.subr.mxu0 0.0
    %2455 = vmatpush1.msra.mxu0 0.0
    %2456 = vmatprep.subr.mxu0 0.0
    %2457 = vmatpush1.msra.mxu0 0.0
    %2458 = vmatprep.subr.mxu0 0.0
    %2459 = vmatpush1.msra.mxu0 0.0
    %2460 = vmatprep.subr.mxu0 0.0
    %2461 = vmatpush1.msra.mxu0 0.0
    %2462 = vmatprep.subr.mxu0 0.0
    %2463 = vmatpush1.msra.mxu0 0.0
    %2464 = vmatprep.subr.mxu0 0.0
    %2465 = vmatpush1.msra.mxu0 0.0
    %2466 = vmatprep.subr.mxu0 0.0
    %2467 = vmatpush1.msra.mxu0 0.0
    %2468 = vmatprep.subr.mxu0 0.0
    %2469 = vmatpush1.msra.mxu0 0.0
    %2470 = vmatprep.subr.mxu0 0.0
    %2471 = vmatpush1.msra.mxu0 0.0
    %2472 = vmatprep.subr.mxu0 0.0
    %2473 = vmatpush1.msra.mxu0 0.0
    %2474 = vmatprep.subr.mxu0 0.0
    %2475 = vmatpush1.msra.mxu0 0.0
    %2476 = vmatprep.subr.mxu0 0.0
    %2477 = vmatpush1.msra.mxu0 0.0
    %2478 = vmatprep.subr.mxu0 0.0
    %2479 = vmatpush1.msra.mxu0 0.0
    %2480 = vmatprep.subr.mxu0 0.0
    %2481 = vmatpush1.msra.mxu0 0.0
    %2482 = vmatprep.subr.mxu0 0.0
    %2483 = vmatpush1.msra.mxu0 0.0
    %2484 = vmatprep.subr.mxu0 0.0
    %2485 = vmatpush1.msra.mxu0 0.0
    %2486 = vmatprep.subr.mxu0 0.0
    %2487 = vmatpush1.msra.mxu0 0.0
    %2488 = vmatprep.subr.mxu0 0.0
    %2489 = vmatpush1.msra.mxu0 0.0
    %2490 = vmatprep.subr.mxu0 0.0
    %2491 = vmatpush1.msra.mxu0 0.0
    %2492 = vmatprep.subr.mxu0 0.0
    %2493 = vmatpush1.msra.mxu0 0.0
    %2494 = vmatprep.subr.mxu0 0.0
    %2495 = vmatpush1.msra.mxu0 0.0
    %2496 = vmatprep.subr.mxu0 0.0
    %2497 = vmatpush1.msra.mxu0 0.0
    %2498 = vmatprep.subr.mxu0 0.0
    %2499 = vmatpush1.msra.mxu0 0.0
    %2500 = vmatprep.subr.mxu0 0.0
    %2501 = vmatpush1.msra.mxu0 0.0
    %2502 = vmatprep.subr.mxu0 0.0
    %2503 = vmatpush1.msra.mxu0 0.0
    %2504 = vmatprep.subr.mxu0 0.0
    %2505 = vmatpush1.msra.mxu0 0.0
    %2506 = vmatprep.mubr.f32.mxu0 0.0
    %2507 = vmatmul.mubr.f32.gmra.mrb[0].mxu0 %v2440
    %v2508 = vpop.f32.mrb[0].mxu0
    %v2509 = vadd.f32 %v2438, %v2508
    %v2510 = vpop.f32.mrb[0].mxu0
    %2511 = vdwg.mxu0
    %v2512 = vmax.f32 %v2509, 0.0
    %v2513 = vld [vmem:[#allocation2 + $0x180] sm:$0xff]
    %v2514 = vld [vmem:[#allocation2 + $0x188] sm:$0xff]
    %v2515 = vld [vmem:[#allocation2 + $0x190] sm:$0xff]
    %v2516 = vld [vmem:[#allocation2 + $0x198] sm:$0xff]
    %v2517 = vld [vmem:[%s4 + $0xc] sm:$0x1]
    %v2518 = vlaneseq
    %v2519 = vshrl.u32 %v2518, 7
    %v2520 = vsub.s32 0, %v2519
    %v2521 = vrot.slane %v2517, %v2520
    %v2523 = vsel %vm171, %v2512, 0
    %2525 = vmatprep.subr.mxu0 0.0
    %2526 = vmatpush1.msra.mxu0 %v2513
    %2527 = vmatprep.subr.mxu0 0.0
    %2528 = vmatpush1.msra.mxu0 %v2514
    %2529 = vmatprep.subr.mxu0 0.0
    %2530 = vmatpush1.msra.mxu0 %v2515
    %2531 = vmatprep.subr.mxu0 0.0
    %2532 = vmatpush1.msra.mxu0 %v2516
    %2533 = vmatprep.subr.mxu0 0.0
    %2534 = vmatpush1.msra.mxu0 0.0
    %2535 = vmatprep.subr.mxu0 0.0
    %2536 = vmatpush1.msra.mxu0 0.0
    %2537 = vmatprep.subr.mxu0 0.0
    %2538 = vmatpush1.msra.mxu0 0.0
    %2539 = vmatprep.subr.mxu0 0.0
    %2540 = vmatpush1.msra.mxu0 0.0
    %2541 = vmatprep.subr.mxu0 0.0
    %2542 = vmatpush1.msra.mxu0 0.0
    %2543 = vmatprep.subr.mxu0 0.0
    %2544 = vmatpush1.msra.mxu0 0.0
    %2545 = vmatprep.subr.mxu0 0.0
    %2546 = vmatpush1.msra.mxu0 0.0
    %2547 = vmatprep.subr.mxu0 0.0
    %2548 = vmatpush1.msra.mxu0 0.0
    %2549 = vmatprep.subr.mxu0 0.0
    %2550 = vmatpush1.msra.mxu0 0.0
    %2551 = vmatprep.subr.mxu0 0.0
    %2552 = vmatpush1.msra.mxu0 0.0
    %2553 = vmatprep.subr.mxu0 0.0
    %2554 = vmatpush1.msra.mxu0 0.0
    %2555 = vmatprep.subr.mxu0 0.0
    %2556 = vmatpush1.msra.mxu0 0.0
    %2557 = vmatprep.subr.mxu0 0.0
    %2558 = vmatpush1.msra.mxu0 0.0
    %2559 = vmatprep.subr.mxu0 0.0
    %2560 = vmatpush1.msra.mxu0 0.0
    %2561 = vmatprep.subr.mxu0 0.0
    %2562 = vmatpush1.msra.mxu0 0.0
    %2563 = vmatprep.subr.mxu0 0.0
    %2564 = vmatpush1.msra.mxu0 0.0
    %2565 = vmatprep.subr.mxu0 0.0
    %2566 = vmatpush1.msra.mxu0 0.0
    %2567 = vmatprep.subr.mxu0 0.0
    %2568 = vmatpush1.msra.mxu0 0.0
    %2569 = vmatprep.subr.mxu0 0.0
    %2570 = vmatpush1.msra.mxu0 0.0
    %2571 = vmatprep.subr.mxu0 0.0
    %2572 = vmatpush1.msra.mxu0 0.0
    %2573 = vmatprep.subr.mxu0 0.0
    %2574 = vmatpush1.msra.mxu0 0.0
    %2575 = vmatprep.subr.mxu0 0.0
    %2576 = vmatpush1.msra.mxu0 0.0
    %2577 = vmatprep.subr.mxu0 0.0
    %2578 = vmatpush1.msra.mxu0 0.0
    %2579 = vmatprep.subr.mxu0 0.0
    %2580 = vmatpush1.msra.mxu0 0.0
    %2581 = vmatprep.subr.mxu0 0.0
    %2582 = vmatpush1.msra.mxu0 0.0
    %2583 = vmatprep.subr.mxu0 0.0
    %2584 = vmatpush1.msra.mxu0 0.0
    %2585 = vmatprep.subr.mxu0 0.0
    %2586 = vmatpush1.msra.mxu0 0.0
    %2587 = vmatprep.subr.mxu0 0.0
    %2588 = vmatpush1.msra.mxu0 0.0
    %2589 = vmatprep.mubr.f32.mxu0 0.0
    %2590 = vmatmul.mubr.f32.gmra.mrb[0].mxu0 %v2523
    %v2591 = vpop.f32.mrb[0].mxu0
    %v2592 = vadd.f32 %v2521, %v2591
    %v2593 = vpop.f32.mrb[0].mxu0
    %2594 = vdwg.mxu0
    %v2595 = vmax.f32 %v2592, 0.0
    %v2596 = vld [vmem:[%s4 + $0xd] sm:$0x1]
    %v2597 = vlaneseq
    %v2598 = vshrl.u32 %v2597, 7
    %v2599 = vsub.s32 0, %v2598
    %v2600 = vrot.slane %v2596, %v2599
    %v2601 = vmul.f32 %v2595, %v2600
    %vm2602 = vcmask 123904
    %v2603 = vsel %vm2602, %v2601, 0.0
    %2604 = vadd.xlane.f32.xlu0 %v2603
    %v2605 = vpop.xlane.xlu0 %2604
    %v2606 = vld [vmem:[%s4 + $0xe] sm:$0x1]
    %v2607 = vlaneseq
    %v2608 = vshrl.u32 %v2607, 7
    %v2609 = vsub.s32 0, %v2608
    %v2610 = vrot.slane %v2606, %v2609
    %2612 = vrot.lane.b32.xlu0 %v2610, 4
    %v2613 = vpop.permute.xlu0 %2612
    %v2615 = vmul.f32 %v2351, %v2613
    %2617 = vrot.lane.b32.xlu0 %v2615, 124
    %v2618 = vpop.permute.xlu0 %2617
    %vm2620 = vcmask 58368
    %v2621 = vsel %vm2620, %v2618, 0.0
    %2622 = vadd.xlane.f32.xlu0 %v2621
    %v2623 = vpop.xlane.xlu0 %2622
    %v2624 = vadd.f32 %v2605, %v2623
    %v2625 = vld [vmem:[%s4 + $0xf] sm:$0x1]
    %v2626 = vlaneseq
    %v2627 = vshrl.u32 %v2626, 7
    %v2628 = vsub.s32 0, %v2627
    %v2629 = vrot.slane %v2625, %v2628
    %v2630 = vadd.f32 %v2624, %v2629
    %v2631 = vsub.f32 0.0, %v2630
    %v2632 = vmul.f32 %v2631, 1.442695
    %v2633 = vpow.pop %v2632
    %v2634 = vadd.f32 %v2633, 1.0
    %v2635 = vrcp.pop %v2634
    %v2636 = vmul.f32 1.0, %v2635
    %vm2637 = vcmask 1024
    %2638 = vst.msk [vmem:[%s5] sm:$0x3] %vm2637, %v2636
    // Predicated region
    $region26: #{tpu_custom_call.1} parent=1 // pred_check
      _
    $region27: #{tpu_custom_call.1} parent=1 // pred_check_branch
      %2640 = sbr.rel (0) target = $region29
    $region28: #{tpu_custom_call.1} parent=1 // pred_region
      _
    $region29: #{tpu_custom_call.1} parent=1 // pred_fallthru
      _
    // Predicated region
    $region30: #{tpu_custom_call.1} parent=1 // pred_check
      _
    $region31: #{tpu_custom_call.1} parent=1 // pred_check_branch
      %2642 = sbr.rel (0) target = $region33
    $region32: #{tpu_custom_call.1} parent=1 // pred_region
      _
    $region33: #{tpu_custom_call.1} parent=1 // pred_fallthru
      _
    %2643 = vsyncpa [#allocation3], 1

</llo_original>
